<compile_context>
chip_gen: v6e
topology: v6e:2x2x1
jax: 0.10.0
libtpu: 0.0.40
codegen_flags: <defaults>
</compile_context>

<pallas_src>
import functools

import numpy as np
import jax
import jax.numpy as jnp
from jax import lax
from jax.experimental import pallas as pl
from jax.experimental.pallas import tpu as pltpu

INPUT_SIZE = 1
HIDDEN = 50
OUTPUT_SIZE = 1

H_PAD = 128
G_PAD = 4 * H_PAD
OUT_PAD = 128


def lstm_kernel(x_ref, wih_ref, bias_ref, whh_ref, wlin_ref, blin_ref, out_ref,
                *, seq_len):
    whh = whh_ref[...]       # (H_PAD, G_PAD), loaded once, stays in VMEM/vregs
    wih = wih_ref[...]       # (1, G_PAD)
    bias = bias_ref[...]     # (1, G_PAD)

    def step(t, carry):
        h, c = carry                         # each (1, H_PAD), live in vregs
        x_t = x_ref[t]                       # scalar load from SMEM
        # Input projection (x-only, off the h-dependency critical path) fused
        # with the recurrent MXU matmul.
        gates = (x_t * wih + bias
                 + jnp.dot(h, whh, preferred_element_type=jnp.float32))
        i = jax.nn.sigmoid(gates[:, 0 * H_PAD:1 * H_PAD])
        f = jax.nn.sigmoid(gates[:, 1 * H_PAD:2 * H_PAD])
        g = jnp.tanh(gates[:, 2 * H_PAD:3 * H_PAD])
        o = jax.nn.sigmoid(gates[:, 3 * H_PAD:4 * H_PAD])
        c = f * c + i * g
        h = o * jnp.tanh(c)
        return (h, c)

    h0 = jnp.zeros((1, H_PAD), jnp.float32)
    c0 = jnp.zeros((1, H_PAD), jnp.float32)
    h, _ = lax.fori_loop(0, seq_len, step, (h0, c0), unroll=True)

    # Output Linear once: dot(h, w_lin) as VPU mul + XLU lane reduce.
    pred = jnp.sum(h * wlin_ref[...], axis=-1, keepdims=True)    # (1, 1)
    out_ref[...] = pred + blin_ref[...]       # out[0, 0] == predictions[-1]


def lstm_pallas(input_seq, wih_row, bias_row, whh_t, wlin_row, blin, seq_len):
    kernel = functools.partial(lstm_kernel, seq_len=seq_len)
    return pl.pallas_call(
        kernel,
        out_shape=jax.ShapeDtypeStruct((1, OUT_PAD), jnp.float32),
        in_specs=[
            pl.BlockSpec(memory_space=pltpu.MemorySpace.SMEM),   # input_seq
            pl.BlockSpec(memory_space=pltpu.MemorySpace.VMEM),   # wih_row
            pl.BlockSpec(memory_space=pltpu.MemorySpace.VMEM),   # bias_row
            pl.BlockSpec(memory_space=pltpu.MemorySpace.VMEM),   # whh_t
            pl.BlockSpec(memory_space=pltpu.MemorySpace.VMEM),   # wlin_row
            pl.BlockSpec(memory_space=pltpu.MemorySpace.VMEM),   # blin
        ],
        out_specs=pl.BlockSpec(memory_space=pltpu.MemorySpace.VMEM),
    )(input_seq, wih_row, bias_row, whh_t, wlin_row, blin)


def make_params(key):
    """Deterministic params following PyTorch default init U(-1/sqrt(H), 1/sqrt(H))."""
    k = 1.0 / np.sqrt(HIDDEN)
    ks = jax.random.split(key, 6)
    w_ih = jax.random.uniform(ks[0], (4 * HIDDEN, INPUT_SIZE), jnp.float32, -k, k)
    w_hh = jax.random.uniform(ks[1], (4 * HIDDEN, HIDDEN), jnp.float32, -k, k)
    b_ih = jax.random.uniform(ks[2], (4 * HIDDEN,), jnp.float32, -k, k)
    b_hh = jax.random.uniform(ks[3], (4 * HIDDEN,), jnp.float32, -k, k)
    w_lin = jax.random.uniform(ks[4], (OUTPUT_SIZE, HIDDEN), jnp.float32, -k, k)
    b_lin = jax.random.uniform(ks[5], (OUTPUT_SIZE,), jnp.float32, -k, k)
    return w_ih, w_hh, b_ih, b_hh, w_lin, b_lin


def pad_params(w_ih, w_hh, b_ih, b_hh, w_lin, b_lin):
    """Pad into lane-aligned gate-block layout [i|f|g|o] (128 lanes per gate)."""
    w_ih = np.asarray(w_ih); w_hh = np.asarray(w_hh)
    b_ih = np.asarray(b_ih); b_hh = np.asarray(b_hh)
    w_lin = np.asarray(w_lin); b_lin = np.asarray(b_lin)

    wih_row = np.zeros((1, G_PAD), np.float32)     # input_size == 1 -> one row
    bias_row = np.zeros((1, G_PAD), np.float32)
    whh_t = np.zeros((H_PAD, G_PAD), np.float32)
    for gate in range(4):
        src = slice(gate * HIDDEN, (gate + 1) * HIDDEN)
        dst = slice(gate * H_PAD, gate * H_PAD + HIDDEN)
        wih_row[0, dst] = w_ih[src, 0]
        bias_row[0, dst] = b_ih[src] + b_hh[src]
        whh_t[:HIDDEN, dst] = w_hh[src, :].T

    wlin_row = np.zeros((1, H_PAD), np.float32)
    wlin_row[0, :HIDDEN] = w_lin[0, :]
    blin = np.zeros((1, OUT_PAD), np.float32)
    blin[0, :OUTPUT_SIZE] = b_lin
    return (jnp.asarray(wih_row), jnp.asarray(bias_row), jnp.asarray(whh_t),
            jnp.asarray(wlin_row), jnp.asarray(blin))


def lstm_reference(x, w_ih, w_hh, b_ih, b_hh, w_lin, b_lin):
    """Pure-JAX reference matching torch.nn.LSTM (batch 1) + Linear, predictions[-1]."""
    def step(carry, xt):
        h, c = carry
        gates = w_ih @ xt[None] + w_hh @ h + b_ih + b_hh
        i = jax.nn.sigmoid(gates[0 * HIDDEN:1 * HIDDEN])
        f = jax.nn.sigmoid(gates[1 * HIDDEN:2 * HIDDEN])
        g = jnp.tanh(gates[2 * HIDDEN:3 * HIDDEN])
        o = jax.nn.sigmoid(gates[3 * HIDDEN:4 * HIDDEN])
        c = f * c + i * g
        h = o * jnp.tanh(c)
        return (h, c), h

    init = (jnp.zeros((HIDDEN,), jnp.float32), jnp.zeros((HIDDEN,), jnp.float32))
    _, hs = lax.scan(step, init, x)
    preds = hs @ w_lin.T + b_lin           # (T, OUTPUT_SIZE)
    return preds[-1]                        # (OUTPUT_SIZE,)


if __name__ == "__main__":
    key = jax.random.PRNGKey(0)
    k_param, k_x = jax.random.split(key)

    w_ih, w_hh, b_ih, b_hh, w_lin, b_lin = make_params(k_param)
    wih_row, bias_row, whh_t, wlin_row, blin = pad_params(
        w_ih, w_hh, b_ih, b_hh, w_lin, b_lin)

    T = 8
    input_seq = jax.random.normal(k_x, (T,), jnp.float32)

    out_pad = lstm_pallas(input_seq, wih_row, bias_row, whh_t, wlin_row, blin, T)
    out_pad = jax.block_until_ready(out_pad)
    result = out_pad[0, :OUTPUT_SIZE]      # == predictions[-1], shape (1,)

    ref = lstm_reference(input_seq, w_ih, w_hh, b_ih, b_hh, w_lin, b_lin)
    ref = jax.block_until_ready(ref)

    if not np.allclose(np.asarray(result), np.asarray(ref), rtol=1e-4, atol=1e-5):
        raise AssertionError(f"mismatch: pallas={result} ref={ref}")

    # TODO(synk): batching multiple independent sequences into the sublane (M)
    # dimension would fill idle MXU rows, but the module's forward is batch-1.
    print("KERNEL_OK")
</pallas_src>

<mosaic_0001>
module attributes {stable_mosaic.version = 11 : i64} {
  func.func @lstm_kernel(%arg0: memref<8xf32, #tpu.memory_space<smem>>, %arg1: memref<1x512xf32, #tpu.memory_space<vmem>>, %arg2: memref<1x512xf32, #tpu.memory_space<vmem>>, %arg3: memref<128x512xf32, #tpu.memory_space<vmem>>, %arg4: memref<1x128xf32, #tpu.memory_space<vmem>>, %arg5: memref<1x128xf32, #tpu.memory_space<vmem>>, %arg6: memref<1x128xf32, #tpu.memory_space<vmem>>) attributes {dimension_semantics = [], scalar_prefetch = 0 : i64, scratch_operands = 0 : i64, tpu.core_type = #tpu.core_type<tc>} {
    %c0 = arith.constant 0 : index
    %c0_0 = arith.constant 0 : index
    %0 = vector.load %arg3[%c0, %c0_0] : memref<128x512xf32, #tpu.memory_space<vmem>>, vector<128x512xf32>
    %c0_1 = arith.constant 0 : index
    %c0_2 = arith.constant 0 : index
    %1 = vector.load %arg1[%c0_1, %c0_2] : memref<1x512xf32, #tpu.memory_space<vmem>>, vector<1x512xf32>
    %c0_3 = arith.constant 0 : index
    %c0_4 = arith.constant 0 : index
    %2 = vector.load %arg2[%c0_3, %c0_4] : memref<1x512xf32, #tpu.memory_space<vmem>>, vector<1x512xf32>
    %cst = arith.constant 0.000000e+00 : f32
    %3 = vector.broadcast %cst : f32 to vector<1x128xf32>
    %cst_5 = arith.constant 0.000000e+00 : f32
    %4 = vector.broadcast %cst_5 : f32 to vector<1x128xf32>
    %c0_i32 = arith.constant 0 : i32
    %5 = arith.index_cast %c0_i32 : i32 to index
    %6 = memref.load %arg0[%5] : memref<8xf32, #tpu.memory_space<smem>>
    %7 = vector.broadcast %6 : f32 to vector<1x512xf32>
    %8 = arith.mulf %7, %1 : vector<1x512xf32>
    %9 = arith.addf %8, %2 : vector<1x512xf32>
    %cst_6 = arith.constant dense<0.000000e+00> : vector<1x512xf32>
    %10 = tpu.matmul %3, %0, %cst_6 {dimension_numbers = #tpu.dot_dimension_numbers<[1], [0], [0], [1], [0, 0, 1, 1], [], []>} : vector<1x128xf32>, vector<128x512xf32>, vector<1x512xf32> -> vector<1x512xf32>
    %11 = arith.addf %9, %10 : vector<1x512xf32>
    %12 = vector.extract_strided_slice %11 {offsets = [0, 0], sizes = [1, 128], strides = [1, 1]} : vector<1x512xf32> to vector<1x128xf32>
    %13 = arith.negf %12 : vector<1x128xf32>
    %14 = math.exp %13 : vector<1x128xf32>
    %cst_7 = arith.constant 1.000000e+00 : f32
    %15 = vector.broadcast %cst_7 : f32 to vector<1x128xf32>
    %16 = arith.addf %15, %14 : vector<1x128xf32>
    %17 = arith.divf %15, %16 : vector<1x128xf32>
    %18 = vector.extract_strided_slice %11 {offsets = [0, 128], sizes = [1, 128], strides = [1, 1]} : vector<1x512xf32> to vector<1x128xf32>
    %19 = arith.negf %18 : vector<1x128xf32>
    %20 = math.exp %19 : vector<1x128xf32>
    %cst_8 = arith.constant 1.000000e+00 : f32
    %21 = vector.broadcast %cst_8 : f32 to vector<1x128xf32>
    %22 = arith.addf %21, %20 : vector<1x128xf32>
    %23 = arith.divf %21, %22 : vector<1x128xf32>
    %24 = vector.extract_strided_slice %11 {offsets = [0, 256], sizes = [1, 128], strides = [1, 1]} : vector<1x512xf32> to vector<1x128xf32>
    %25 = math.tanh %24 : vector<1x128xf32>
    %26 = vector.extract_strided_slice %11 {offsets = [0, 384], sizes = [1, 128], strides = [1, 1]} : vector<1x512xf32> to vector<1x128xf32>
    %27 = arith.negf %26 : vector<1x128xf32>
    %28 = math.exp %27 : vector<1x128xf32>
    %cst_9 = arith.constant 1.000000e+00 : f32
    %29 = vector.broadcast %cst_9 : f32 to vector<1x128xf32>
    %30 = arith.addf %29, %28 : vector<1x128xf32>
    %31 = arith.divf %29, %30 : vector<1x128xf32>
    %32 = arith.mulf %23, %4 : vector<1x128xf32>
    %33 = arith.mulf %17, %25 : vector<1x128xf32>
    %34 = arith.addf %32, %33 : vector<1x128xf32>
    %35 = math.tanh %34 : vector<1x128xf32>
    %36 = arith.mulf %31, %35 : vector<1x128xf32>
    %c1_i32 = arith.constant 1 : i32
    %37 = arith.index_cast %c1_i32 : i32 to index
    %38 = memref.load %arg0[%37] : memref<8xf32, #tpu.memory_space<smem>>
    %39 = vector.broadcast %38 : f32 to vector<1x512xf32>
    %40 = arith.mulf %39, %1 : vector<1x512xf32>
    %41 = arith.addf %40, %2 : vector<1x512xf32>
    %cst_10 = arith.constant dense<0.000000e+00> : vector<1x512xf32>
    %42 = tpu.matmul %36, %0, %cst_10 {dimension_numbers = #tpu.dot_dimension_numbers<[1], [0], [0], [1], [0, 0, 1, 1], [], []>} : vector<1x128xf32>, vector<128x512xf32>, vector<1x512xf32> -> vector<1x512xf32>
    %43 = arith.addf %41, %42 : vector<1x512xf32>
    %44 = vector.extract_strided_slice %43 {offsets = [0, 0], sizes = [1, 128], strides = [1, 1]} : vector<1x512xf32> to vector<1x128xf32>
    %45 = arith.negf %44 : vector<1x128xf32>
    %46 = math.exp %45 : vector<1x128xf32>
    %cst_11 = arith.constant 1.000000e+00 : f32
    %47 = vector.broadcast %cst_11 : f32 to vector<1x128xf32>
    %48 = arith.addf %47, %46 : vector<1x128xf32>
    %49 = arith.divf %47, %48 : vector<1x128xf32>
    %50 = vector.extract_strided_slice %43 {offsets = [0, 128], sizes = [1, 128], strides = [1, 1]} : vector<1x512xf32> to vector<1x128xf32>
    %51 = arith.negf %50 : vector<1x128xf32>
    %52 = math.exp %51 : vector<1x128xf32>
    %cst_12 = arith.constant 1.000000e+00 : f32
    %53 = vector.broadcast %cst_12 : f32 to vector<1x128xf32>
    %54 = arith.addf %53, %52 : vector<1x128xf32>
    %55 = arith.divf %53, %54 : vector<1x128xf32>
    %56 = vector.extract_strided_slice %43 {offsets = [0, 256], sizes = [1, 128], strides = [1, 1]} : vector<1x512xf32> to vector<1x128xf32>
    %57 = math.tanh %56 : vector<1x128xf32>
    %58 = vector.extract_strided_slice %43 {offsets = [0, 384], sizes = [1, 128], strides = [1, 1]} : vector<1x512xf32> to vector<1x128xf32>
    %59 = arith.negf %58 : vector<1x128xf32>
    %60 = math.exp %59 : vector<1x128xf32>
    %cst_13 = arith.constant 1.000000e+00 : f32
    %61 = vector.broadcast %cst_13 : f32 to vector<1x128xf32>
    %62 = arith.addf %61, %60 : vector<1x128xf32>
    %63 = arith.divf %61, %62 : vector<1x128xf32>
    %64 = arith.mulf %55, %34 : vector<1x128xf32>
    %65 = arith.mulf %49, %57 : vector<1x128xf32>
    %66 = arith.addf %64, %65 : vector<1x128xf32>
    %67 = math.tanh %66 : vector<1x128xf32>
    %68 = arith.mulf %63, %67 : vector<1x128xf32>
    %c2_i32 = arith.constant 2 : i32
    %69 = arith.index_cast %c2_i32 : i32 to index
    %70 = memref.load %arg0[%69] : memref<8xf32, #tpu.memory_space<smem>>
    %71 = vector.broadcast %70 : f32 to vector<1x512xf32>
    %72 = arith.mulf %71, %1 : vector<1x512xf32>
    %73 = arith.addf %72, %2 : vector<1x512xf32>
    %cst_14 = arith.constant dense<0.000000e+00> : vector<1x512xf32>
    %74 = tpu.matmul %68, %0, %cst_14 {dimension_numbers = #tpu.dot_dimension_numbers<[1], [0], [0], [1], [0, 0, 1, 1], [], []>} : vector<1x128xf32>, vector<128x512xf32>, vector<1x512xf32> -> vector<1x512xf32>
    %75 = arith.addf %73, %74 : vector<1x512xf32>
    %76 = vector.extract_strided_slice %75 {offsets = [0, 0], sizes = [1, 128], strides = [1, 1]} : vector<1x512xf32> to vector<1x128xf32>
    %77 = arith.negf %76 : vector<1x128xf32>
    %78 = math.exp %77 : vector<1x128xf32>
    %cst_15 = arith.constant 1.000000e+00 : f32
    %79 = vector.broadcast %cst_15 : f32 to vector<1x128xf32>
    %80 = arith.addf %79, %78 : vector<1x128xf32>
    %81 = arith.divf %79, %80 : vector<1x128xf32>
    %82 = vector.extract_strided_slice %75 {offsets = [0, 128], sizes = [1, 128], strides = [1, 1]} : vector<1x512xf32> to vector<1x128xf32>
    %83 = arith.negf %82 : vector<1x128xf32>
    %84 = math.exp %83 : vector<1x128xf32>
    %cst_16 = arith.constant 1.000000e+00 : f32
    %85 = vector.broadcast %cst_16 : f32 to vector<1x128xf32>
    %86 = arith.addf %85, %84 : vector<1x128xf32>
    %87 = arith.divf %85, %86 : vector<1x128xf32>
    %88 = vector.extract_strided_slice %75 {offsets = [0, 256], sizes = [1, 128], strides = [1, 1]} : vector<1x512xf32> to vector<1x128xf32>
    %89 = math.tanh %88 : vector<1x128xf32>
    %90 = vector.extract_strided_slice %75 {offsets = [0, 384], sizes = [1, 128], strides = [1, 1]} : vector<1x512xf32> to vector<1x128xf32>
    %91 = arith.negf %90 : vector<1x128xf32>
    %92 = math.exp %91 : vector<1x128xf32>
    %cst_17 = arith.constant 1.000000e+00 : f32
    %93 = vector.broadcast %cst_17 : f32 to vector<1x128xf32>
    %94 = arith.addf %93, %92 : vector<1x128xf32>
    %95 = arith.divf %93, %94 : vector<1x128xf32>
    %96 = arith.mulf %87, %66 : vector<1x128xf32>
    %97 = arith.mulf %81, %89 : vector<1x128xf32>
    %98 = arith.addf %96, %97 : vector<1x128xf32>
    %99 = math.tanh %98 : vector<1x128xf32>
    %100 = arith.mulf %95, %99 : vector<1x128xf32>
    %c3_i32 = arith.constant 3 : i32
    %101 = arith.index_cast %c3_i32 : i32 to index
    %102 = memref.load %arg0[%101] : memref<8xf32, #tpu.memory_space<smem>>
    %103 = vector.broadcast %102 : f32 to vector<1x512xf32>
    %104 = arith.mulf %103, %1 : vector<1x512xf32>
    %105 = arith.addf %104, %2 : vector<1x512xf32>
    %cst_18 = arith.constant dense<0.000000e+00> : vector<1x512xf32>
    %106 = tpu.matmul %100, %0, %cst_18 {dimension_numbers = #tpu.dot_dimension_numbers<[1], [0], [0], [1], [0, 0, 1, 1], [], []>} : vector<1x128xf32>, vector<128x512xf32>, vector<1x512xf32> -> vector<1x512xf32>
    %107 = arith.addf %105, %106 : vector<1x512xf32>
    %108 = vector.extract_strided_slice %107 {offsets = [0, 0], sizes = [1, 128], strides = [1, 1]} : vector<1x512xf32> to vector<1x128xf32>
    %109 = arith.negf %108 : vector<1x128xf32>
    %110 = math.exp %109 : vector<1x128xf32>
    %cst_19 = arith.constant 1.000000e+00 : f32
    %111 = vector.broadcast %cst_19 : f32 to vector<1x128xf32>
    %112 = arith.addf %111, %110 : vector<1x128xf32>
    %113 = arith.divf %111, %112 : vector<1x128xf32>
    %114 = vector.extract_strided_slice %107 {offsets = [0, 128], sizes = [1, 128], strides = [1, 1]} : vector<1x512xf32> to vector<1x128xf32>
    %115 = arith.negf %114 : vector<1x128xf32>
    %116 = math.exp %115 : vector<1x128xf32>
    %cst_20 = arith.constant 1.000000e+00 : f32
    %117 = vector.broadcast %cst_20 : f32 to vector<1x128xf32>
    %118 = arith.addf %117, %116 : vector<1x128xf32>
    %119 = arith.divf %117, %118 : vector<1x128xf32>
    %120 = vector.extract_strided_slice %107 {offsets = [0, 256], sizes = [1, 128], strides = [1, 1]} : vector<1x512xf32> to vector<1x128xf32>
    %121 = math.tanh %120 : vector<1x128xf32>
    %122 = vector.extract_strided_slice %107 {offsets = [0, 384], sizes = [1, 128], strides = [1, 1]} : vector<1x512xf32> to vector<1x128xf32>
    %123 = arith.negf %122 : vector<1x128xf32>
    %124 = math.exp %123 : vector<1x128xf32>
    %cst_21 = arith.constant 1.000000e+00 : f32
    %125 = vector.broadcast %cst_21 : f32 to vector<1x128xf32>
    %126 = arith.addf %125, %124 : vector<1x128xf32>
    %127 = arith.divf %125, %126 : vector<1x128xf32>
    %128 = arith.mulf %119, %98 : vector<1x128xf32>
    %129 = arith.mulf %113, %121 : vector<1x128xf32>
    %130 = arith.addf %128, %129 : vector<1x128xf32>
    %131 = math.tanh %130 : vector<1x128xf32>
    %132 = arith.mulf %127, %131 : vector<1x128xf32>
    %c4_i32 = arith.constant 4 : i32
    %133 = arith.index_cast %c4_i32 : i32 to index
    %134 = memref.load %arg0[%133] : memref<8xf32, #tpu.memory_space<smem>>
    %135 = vector.broadcast %134 : f32 to vector<1x512xf32>
    %136 = arith.mulf %135, %1 : vector<1x512xf32>
    %137 = arith.addf %136, %2 : vector<1x512xf32>
    %cst_22 = arith.constant dense<0.000000e+00> : vector<1x512xf32>
    %138 = tpu.matmul %132, %0, %cst_22 {dimension_numbers = #tpu.dot_dimension_numbers<[1], [0], [0], [1], [0, 0, 1, 1], [], []>} : vector<1x128xf32>, vector<128x512xf32>, vector<1x512xf32> -> vector<1x512xf32>
    %139 = arith.addf %137, %138 : vector<1x512xf32>
    %140 = vector.extract_strided_slice %139 {offsets = [0, 0], sizes = [1, 128], strides = [1, 1]} : vector<1x512xf32> to vector<1x128xf32>
    %141 = arith.negf %140 : vector<1x128xf32>
    %142 = math.exp %141 : vector<1x128xf32>
    %cst_23 = arith.constant 1.000000e+00 : f32
    %143 = vector.broadcast %cst_23 : f32 to vector<1x128xf32>
    %144 = arith.addf %143, %142 : vector<1x128xf32>
    %145 = arith.divf %143, %144 : vector<1x128xf32>
    %146 = vector.extract_strided_slice %139 {offsets = [0, 128], sizes = [1, 128], strides = [1, 1]} : vector<1x512xf32> to vector<1x128xf32>
    %147 = arith.negf %146 : vector<1x128xf32>
    %148 = math.exp %147 : vector<1x128xf32>
    %cst_24 = arith.constant 1.000000e+00 : f32
    %149 = vector.broadcast %cst_24 : f32 to vector<1x128xf32>
    %150 = arith.addf %149, %148 : vector<1x128xf32>
    %151 = arith.divf %149, %150 : vector<1x128xf32>
    %152 = vector.extract_strided_slice %139 {offsets = [0, 256], sizes = [1, 128], strides = [1, 1]} : vector<1x512xf32> to vector<1x128xf32>
    %153 = math.tanh %152 : vector<1x128xf32>
    %154 = vector.extract_strided_slice %139 {offsets = [0, 384], sizes = [1, 128], strides = [1, 1]} : vector<1x512xf32> to vector<1x128xf32>
    %155 = arith.negf %154 : vector<1x128xf32>
    %156 = math.exp %155 : vector<1x128xf32>
    %cst_25 = arith.constant 1.000000e+00 : f32
    %157 = vector.broadcast %cst_25 : f32 to vector<1x128xf32>
    %158 = arith.addf %157, %156 : vector<1x128xf32>
    %159 = arith.divf %157, %158 : vector<1x128xf32>
    %160 = arith.mulf %151, %130 : vector<1x128xf32>
    %161 = arith.mulf %145, %153 : vector<1x128xf32>
    %162 = arith.addf %160, %161 : vector<1x128xf32>
    %163 = math.tanh %162 : vector<1x128xf32>
    %164 = arith.mulf %159, %163 : vector<1x128xf32>
    %c5_i32 = arith.constant 5 : i32
    %165 = arith.index_cast %c5_i32 : i32 to index
    %166 = memref.load %arg0[%165] : memref<8xf32, #tpu.memory_space<smem>>
    %167 = vector.broadcast %166 : f32 to vector<1x512xf32>
    %168 = arith.mulf %167, %1 : vector<1x512xf32>
    %169 = arith.addf %168, %2 : vector<1x512xf32>
    %cst_26 = arith.constant dense<0.000000e+00> : vector<1x512xf32>
    %170 = tpu.matmul %164, %0, %cst_26 {dimension_numbers = #tpu.dot_dimension_numbers<[1], [0], [0], [1], [0, 0, 1, 1], [], []>} : vector<1x128xf32>, vector<128x512xf32>, vector<1x512xf32> -> vector<1x512xf32>
    %171 = arith.addf %169, %170 : vector<1x512xf32>
    %172 = vector.extract_strided_slice %171 {offsets = [0, 0], sizes = [1, 128], strides = [1, 1]} : vector<1x512xf32> to vector<1x128xf32>
    %173 = arith.negf %172 : vector<1x128xf32>
    %174 = math.exp %173 : vector<1x128xf32>
    %cst_27 = arith.constant 1.000000e+00 : f32
    %175 = vector.broadcast %cst_27 : f32 to vector<1x128xf32>
    %176 = arith.addf %175, %174 : vector<1x128xf32>
    %177 = arith.divf %175, %176 : vector<1x128xf32>
    %178 = vector.extract_strided_slice %171 {offsets = [0, 128], sizes = [1, 128], strides = [1, 1]} : vector<1x512xf32> to vector<1x128xf32>
    %179 = arith.negf %178 : vector<1x128xf32>
    %180 = math.exp %179 : vector<1x128xf32>
    %cst_28 = arith.constant 1.000000e+00 : f32
    %181 = vector.broadcast %cst_28 : f32 to vector<1x128xf32>
    %182 = arith.addf %181, %180 : vector<1x128xf32>
    %183 = arith.divf %181, %182 : vector<1x128xf32>
    %184 = vector.extract_strided_slice %171 {offsets = [0, 256], sizes = [1, 128], strides = [1, 1]} : vector<1x512xf32> to vector<1x128xf32>
    %185 = math.tanh %184 : vector<1x128xf32>
    %186 = vector.extract_strided_slice %171 {offsets = [0, 384], sizes = [1, 128], strides = [1, 1]} : vector<1x512xf32> to vector<1x128xf32>
    %187 = arith.negf %186 : vector<1x128xf32>
    %188 = math.exp %187 : vector<1x128xf32>
    %cst_29 = arith.constant 1.000000e+00 : f32
    %189 = vector.broadcast %cst_29 : f32 to vector<1x128xf32>
    %190 = arith.addf %189, %188 : vector<1x128xf32>
    %191 = arith.divf %189, %190 : vector<1x128xf32>
    %192 = arith.mulf %183, %162 : vector<1x128xf32>
    %193 = arith.mulf %177, %185 : vector<1x128xf32>
    %194 = arith.addf %192, %193 : vector<1x128xf32>
    %195 = math.tanh %194 : vector<1x128xf32>
    %196 = arith.mulf %191, %195 : vector<1x128xf32>
    %c6_i32 = arith.constant 6 : i32
    %197 = arith.index_cast %c6_i32 : i32 to index
    %198 = memref.load %arg0[%197] : memref<8xf32, #tpu.memory_space<smem>>
    %199 = vector.broadcast %198 : f32 to vector<1x512xf32>
    %200 = arith.mulf %199, %1 : vector<1x512xf32>
    %201 = arith.addf %200, %2 : vector<1x512xf32>
    %cst_30 = arith.constant dense<0.000000e+00> : vector<1x512xf32>
    %202 = tpu.matmul %196, %0, %cst_30 {dimension_numbers = #tpu.dot_dimension_numbers<[1], [0], [0], [1], [0, 0, 1, 1], [], []>} : vector<1x128xf32>, vector<128x512xf32>, vector<1x512xf32> -> vector<1x512xf32>
    %203 = arith.addf %201, %202 : vector<1x512xf32>
    %204 = vector.extract_strided_slice %203 {offsets = [0, 0], sizes = [1, 128], strides = [1, 1]} : vector<1x512xf32> to vector<1x128xf32>
    %205 = arith.negf %204 : vector<1x128xf32>
    %206 = math.exp %205 : vector<1x128xf32>
    %cst_31 = arith.constant 1.000000e+00 : f32
    %207 = vector.broadcast %cst_31 : f32 to vector<1x128xf32>
    %208 = arith.addf %207, %206 : vector<1x128xf32>
    %209 = arith.divf %207, %208 : vector<1x128xf32>
    %210 = vector.extract_strided_slice %203 {offsets = [0, 128], sizes = [1, 128], strides = [1, 1]} : vector<1x512xf32> to vector<1x128xf32>
    %211 = arith.negf %210 : vector<1x128xf32>
    %212 = math.exp %211 : vector<1x128xf32>
    %cst_32 = arith.constant 1.000000e+00 : f32
    %213 = vector.broadcast %cst_32 : f32 to vector<1x128xf32>
    %214 = arith.addf %213, %212 : vector<1x128xf32>
    %215 = arith.divf %213, %214 : vector<1x128xf32>
    %216 = vector.extract_strided_slice %203 {offsets = [0, 256], sizes = [1, 128], strides = [1, 1]} : vector<1x512xf32> to vector<1x128xf32>
    %217 = math.tanh %216 : vector<1x128xf32>
    %218 = vector.extract_strided_slice %203 {offsets = [0, 384], sizes = [1, 128], strides = [1, 1]} : vector<1x512xf32> to vector<1x128xf32>
    %219 = arith.negf %218 : vector<1x128xf32>
    %220 = math.exp %219 : vector<1x128xf32>
    %cst_33 = arith.constant 1.000000e+00 : f32
    %221 = vector.broadcast %cst_33 : f32 to vector<1x128xf32>
    %222 = arith.addf %221, %220 : vector<1x128xf32>
    %223 = arith.divf %221, %222 : vector<1x128xf32>
    %224 = arith.mulf %215, %194 : vector<1x128xf32>
    %225 = arith.mulf %209, %217 : vector<1x128xf32>
    %226 = arith.addf %224, %225 : vector<1x128xf32>
    %227 = math.tanh %226 : vector<1x128xf32>
    %228 = arith.mulf %223, %227 : vector<1x128xf32>
    %c7_i32 = arith.constant 7 : i32
    %229 = arith.index_cast %c7_i32 : i32 to index
    %230 = memref.load %arg0[%229] : memref<8xf32, #tpu.memory_space<smem>>
    %231 = vector.broadcast %230 : f32 to vector<1x512xf32>
    %232 = arith.mulf %231, %1 : vector<1x512xf32>
    %233 = arith.addf %232, %2 : vector<1x512xf32>
    %cst_34 = arith.constant dense<0.000000e+00> : vector<1x512xf32>
    %234 = tpu.matmul %228, %0, %cst_34 {dimension_numbers = #tpu.dot_dimension_numbers<[1], [0], [0], [1], [0, 0, 1, 1], [], []>} : vector<1x128xf32>, vector<128x512xf32>, vector<1x512xf32> -> vector<1x512xf32>
    %235 = arith.addf %233, %234 : vector<1x512xf32>
    %236 = vector.extract_strided_slice %235 {offsets = [0, 0], sizes = [1, 128], strides = [1, 1]} : vector<1x512xf32> to vector<1x128xf32>
    %237 = arith.negf %236 : vector<1x128xf32>
    %238 = math.exp %237 : vector<1x128xf32>
    %cst_35 = arith.constant 1.000000e+00 : f32
    %239 = vector.broadcast %cst_35 : f32 to vector<1x128xf32>
    %240 = arith.addf %239, %238 : vector<1x128xf32>
    %241 = arith.divf %239, %240 : vector<1x128xf32>
    %242 = vector.extract_strided_slice %235 {offsets = [0, 128], sizes = [1, 128], strides = [1, 1]} : vector<1x512xf32> to vector<1x128xf32>
    %243 = arith.negf %242 : vector<1x128xf32>
    %244 = math.exp %243 : vector<1x128xf32>
    %cst_36 = arith.constant 1.000000e+00 : f32
    %245 = vector.broadcast %cst_36 : f32 to vector<1x128xf32>
    %246 = arith.addf %245, %244 : vector<1x128xf32>
    %247 = arith.divf %245, %246 : vector<1x128xf32>
    %248 = vector.extract_strided_slice %235 {offsets = [0, 256], sizes = [1, 128], strides = [1, 1]} : vector<1x512xf32> to vector<1x128xf32>
    %249 = math.tanh %248 : vector<1x128xf32>
    %250 = vector.extract_strided_slice %235 {offsets = [0, 384], sizes = [1, 128], strides = [1, 1]} : vector<1x512xf32> to vector<1x128xf32>
    %251 = arith.negf %250 : vector<1x128xf32>
    %252 = math.exp %251 : vector<1x128xf32>
    %cst_37 = arith.constant 1.000000e+00 : f32
    %253 = vector.broadcast %cst_37 : f32 to vector<1x128xf32>
    %254 = arith.addf %253, %252 : vector<1x128xf32>
    %255 = arith.divf %253, %254 : vector<1x128xf32>
    %256 = arith.mulf %247, %226 : vector<1x128xf32>
    %257 = arith.mulf %241, %249 : vector<1x128xf32>
    %258 = arith.addf %256, %257 : vector<1x128xf32>
    %259 = math.tanh %258 : vector<1x128xf32>
    %260 = arith.mulf %255, %259 : vector<1x128xf32>
    %c8_i32 = arith.constant 8 : i32
    %c0_38 = arith.constant 0 : index
    %c0_39 = arith.constant 0 : index
    %261 = vector.load %arg4[%c0_38, %c0_39] : memref<1x128xf32, #tpu.memory_space<vmem>>, vector<1x128xf32>
    %262 = arith.mulf %260, %261 : vector<1x128xf32>
    %cst_40 = arith.constant dense<0.000000e+00> : vector<1xf32>
    %263 = vector.multi_reduction <add>, %262, %cst_40 [1] : vector<1x128xf32> to vector<1xf32>
    %264 = vector.shape_cast %263 : vector<1xf32> to vector<1x1xf32>
    %c0_41 = arith.constant 0 : index
    %c0_42 = arith.constant 0 : index
    %265 = vector.load %arg5[%c0_41, %c0_42] : memref<1x128xf32, #tpu.memory_space<vmem>>, vector<1x128xf32>
    %266 = vector.broadcast %264 : vector<1x1xf32> to vector<1x128xf32>
    %267 = arith.addf %266, %265 : vector<1x128xf32>
    %c0_43 = arith.constant 0 : index
    %c0_44 = arith.constant 0 : index
    %268 = vector.load %arg6[%c0_43, %c0_44] : memref<1x128xf32, #tpu.memory_space<vmem>>, vector<1x128xf32>
    tpu.vector_store %arg6[%c0_43, %c0_44], %267 {strides = array<i32>} : memref<1x128xf32, #tpu.memory_space<vmem>>, vector<1x128xf32>,
    return
  }
}

</mosaic_0001>

<llo_original>
// kernel: tpu_custom_call.1
$region0: #{tpu_custom_call.1}
  #allocation0 [shape = 'u32[]', space=smem, size = 0x4, offset = 0x4, fixed_abs, tag = 'smem constant byte address 0x4 - core index']
  #allocation1 [shape = 'u32[144,128]{1,0:T(1,128)}', space=vmem, size = 0x12000, scoped, tag = 'internal scratch']
  %s0 = inlined_call_operand.hbm [shape: f32[8], index: 0, kind: input, shape index: {}]
  %s1 = inlined_call_operand.hbm [shape: f32[1,512], index: 1, kind: input, shape index: {}]
  %s2 = inlined_call_operand.hbm [shape: f32[1,512], index: 2, kind: input, shape index: {}]
  %s3 = inlined_call_operand.hbm [shape: f32[128,512], index: 3, kind: input, shape index: {}]
  %s4 = inlined_call_operand.vmem [shape: f32[1,128], index: 4, kind: input, shape index: {}]
  %s5 = inlined_call_operand.vmem [shape: f32[1,128], index: 5, kind: input, shape index: {}]
  %s6 = inlined_call_operand.hbm [shape: f32[1,128], index: 6, kind: output, shape index: {}]
  %s7 = sld [smem:[#allocation0]]
  $region50: #{tpu_custom_call.1} parent=0
    _
  %s9 = ssub.s32 1, %s7
  %s10 = scalar_select 0, %s9, %s7
  $region1: #{tpu_custom_call.1} parent=0
    #allocation2 [shape = 'u8[512]{0}', space=smem, size = 0x200, scoped, tag = 'input window, operand 0, single buffered']
    #allocation3 [shape = 's32[1]{0}', space=sflag, size = 0x4, scoped, tag = 'scoped memory for tpu_custom_call.1']
    #allocation4 [shape = 's32[1]{0}', space=sflag, size = 0x4, scoped, tag = 'scoped memory for tpu_custom_call.1']
    #allocation5 [shape = 's32[1]{0}', space=sflag, size = 0x4, scoped, tag = 'scoped memory for tpu_custom_call.1']
    #allocation6 [shape = 'u8[2048]{0}', space=vmem, size = 0x800, scoped, tag = 'input window, operand 1, single buffered']
    #allocation7 [shape = 'u8[2048]{0}', space=vmem, size = 0x800, scoped, tag = 'input window, operand 2, single buffered']
    #allocation8 [shape = 's32[1]{0}', space=sflag, size = 0x4, scoped, tag = 'scoped memory for tpu_custom_call.1']
    #allocation9 [shape = 'u8[262144]{0}', space=vmem, size = 0x40000, scoped, tag = 'input window, operand 3, single buffered']
    #allocation10 [shape = 'u8[512]{0}', space=vmem, size = 0x400, scoped, tag = 'output window, operand 0, single buffered']
    %11 = vsyncpa [#allocation5], 0
    %12 = vsyncpa [#allocation3], 0
    %13 = vsyncpa [#allocation8], 0
    %14 = vsyncpa [#allocation4], 0
    // Predicated region
    $region2: #{tpu_custom_call.1} parent=1 // pred_check
      _
    $region3: #{tpu_custom_call.1} parent=1 // pred_check_branch
      %16 = sbr.rel (0) target = $region5
    $region4: #{tpu_custom_call.1} parent=1 // pred_region
      %s18 = ssub.s32 16, 16
      %19 = vsyncadd [#allocation5], %s18
      %22 = dma.hbm_to_smem %s0, 16, [#allocation2], [#allocation5]
    $region5: #{tpu_custom_call.1} parent=1 // pred_fallthru
      _
    // Predicated region
    $region6: #{tpu_custom_call.1} parent=1 // pred_check
      _
    $region7: #{tpu_custom_call.1} parent=1 // pred_check_branch
      %24 = sbr.rel (0) target = $region9
    $region8: #{tpu_custom_call.1} parent=1 // pred_region
      %s26 = ssub.s32 64, 64
      %27 = vsyncadd [#allocation3], %s26
      %s29 = sshll.u32 [#allocation6], 4
      %s30 = int_to_ptr.vmem [resolvable:$true] %s29
      %32 = dma.hbm_to_vmem [thread:$0]  %s1, 64, %s30, [#allocation3]
    $region9: #{tpu_custom_call.1} parent=1 // pred_fallthru
      _
    // Predicated region
    $region10: #{tpu_custom_call.1} parent=1 // pred_check
      _
    $region11: #{tpu_custom_call.1} parent=1 // pred_check_branch
      %34 = sbr.rel (0) target = $region13
    $region12: #{tpu_custom_call.1} parent=1 // pred_region
      %s36 = ssub.s32 64, 64
      %37 = vsyncadd [#allocation8], %s36
      %s39 = sshll.u32 [#allocation7], 4
      %s40 = int_to_ptr.vmem [resolvable:$true] %s39
      %42 = dma.hbm_to_vmem [thread:$0]  %s2, 64, %s40, [#allocation8]
    $region13: #{tpu_custom_call.1} parent=1 // pred_fallthru
      _
    // Predicated region
    $region14: #{tpu_custom_call.1} parent=1 // pred_check
      _
    $region15: #{tpu_custom_call.1} parent=1 // pred_check_branch
      %44 = sbr.rel (0) target = $region17
    $region16: #{tpu_custom_call.1} parent=1 // pred_region
      %s46 = ssub.s32 8192, 8192
      %47 = vsyncadd [#allocation8], %s46
      %s48 = sshll.u32 [#allocation9], 4
      %s49 = int_to_ptr.vmem [resolvable:$true] %s48
      %54 = dma.hbm_to_vmem [thread:$0]  %s3, 8192, %s49, [#allocation8], 512, 512, 32
    $region17: #{tpu_custom_call.1} parent=1 // pred_fallthru
      _
    // Predicated region
    $region18: #{tpu_custom_call.1} parent=1 // pred_check
      _
    $region19: #{tpu_custom_call.1} parent=1 // pred_check_branch
      %56 = sbr.rel (0) target = $region21
    $region20: #{tpu_custom_call.1} parent=1 // pred_region
      _
    $region21: #{tpu_custom_call.1} parent=1 // pred_fallthru
      _
    // Predicated region
    $region22: #{tpu_custom_call.1} parent=1 // pred_check
      _
    $region23: #{tpu_custom_call.1} parent=1 // pred_check_branch
      %58 = sbr.rel (0) target = $region25
    $region24: #{tpu_custom_call.1} parent=1 // pred_region
      _
    $region25: #{tpu_custom_call.1} parent=1 // pred_fallthru
      _
    // Predicated region
    $region26: #{tpu_custom_call.1} parent=1 // pred_check
      _
    $region27: #{tpu_custom_call.1} parent=1 // pred_check_branch
      %60 = sbr.rel (0) target = $region29
    $region28: #{tpu_custom_call.1} parent=1 // pred_region
      %61 = dma.done [#allocation5], 16
    $region29: #{tpu_custom_call.1} parent=1 // pred_fallthru
      _
    // Predicated region
    $region30: #{tpu_custom_call.1} parent=1 // pred_check
      _
    $region31: #{tpu_custom_call.1} parent=1 // pred_check_branch
      %63 = sbr.rel (0) target = $region33
    $region32: #{tpu_custom_call.1} parent=1 // pred_region
      %64 = dma.done [#allocation3], 64
    $region33: #{tpu_custom_call.1} parent=1 // pred_fallthru
      _
    // Predicated region
    $region34: #{tpu_custom_call.1} parent=1 // pred_check
      _
    $region35: #{tpu_custom_call.1} parent=1 // pred_check_branch
      %66 = sbr.rel (0) target = $region37
    $region36: #{tpu_custom_call.1} parent=1 // pred_region
      %67 = dma.done [#allocation8], 64
    $region37: #{tpu_custom_call.1} parent=1 // pred_fallthru
      _
    // Predicated region
    $region38: #{tpu_custom_call.1} parent=1 // pred_check
      _
    $region39: #{tpu_custom_call.1} parent=1 // pred_check_branch
      %69 = sbr.rel (0) target = $region41
    $region40: #{tpu_custom_call.1} parent=1 // pred_region
      %70 = dma.done [#allocation8], 8192
    $region41: #{tpu_custom_call.1} parent=1 // pred_fallthru
      _
    %71 = sfence
    %v72 = vld [vmem:[#allocation9] sm:$0xff]
    %v73 = vld [vmem:[#allocation9 + $0x8] sm:$0xff]
    %v74 = vld [vmem:[#allocation9 + $0x10] sm:$0xff]
    %v75 = vld [vmem:[#allocation9 + $0x18] sm:$0xff]
    %v76 = vld [vmem:[#allocation9 + $0x20] sm:$0xff]
    %v77 = vld [vmem:[#allocation9 + $0x28] sm:$0xff]
    %v78 = vld [vmem:[#allocation9 + $0x30] sm:$0xff]
    %v79 = vld [vmem:[#allocation9 + $0x38] sm:$0xff]
    %v80 = vld [vmem:[#allocation9 + $0x40] sm:$0xff]
    %v81 = vld [vmem:[#allocation9 + $0x48] sm:$0xff]
    %v82 = vld [vmem:[#allocation9 + $0x50] sm:$0xff]
    %v83 = vld [vmem:[#allocation9 + $0x58] sm:$0xff]
    %v84 = vld [vmem:[#allocation9 + $0x60] sm:$0xff]
    %v85 = vld [vmem:[#allocation9 + $0x68] sm:$0xff]
    %v86 = vld [vmem:[#allocation9 + $0x70] sm:$0xff]
    %v87 = vld [vmem:[#allocation9 + $0x78] sm:$0xff]
    %v88 = vld [vmem:[#allocation9 + $0x80] sm:$0xff]
    %v89 = vld [vmem:[#allocation9 + $0x88] sm:$0xff]
    %v90 = vld [vmem:[#allocation9 + $0x90] sm:$0xff]
    %v91 = vld [vmem:[#allocation9 + $0x98] sm:$0xff]
    %v92 = vld [vmem:[#allocation9 + $0xa0] sm:$0xff]
    %v93 = vld [vmem:[#allocation9 + $0xa8] sm:$0xff]
    %v94 = vld [vmem:[#allocation9 + $0xb0] sm:$0xff]
    %v95 = vld [vmem:[#allocation9 + $0xb8] sm:$0xff]
    %v96 = vld [vmem:[#allocation9 + $0xc0] sm:$0xff]
    %v97 = vld [vmem:[#allocation9 + $0xc8] sm:$0xff]
    %v98 = vld [vmem:[#allocation9 + $0xd0] sm:$0xff]
    %v99 = vld [vmem:[#allocation9 + $0xd8] sm:$0xff]
    %v100 = vld [vmem:[#allocation9 + $0xe0] sm:$0xff]
    %v101 = vld [vmem:[#allocation9 + $0xe8] sm:$0xff]
    %v102 = vld [vmem:[#allocation9 + $0xf0] sm:$0xff]
    %v103 = vld [vmem:[#allocation9 + $0xf8] sm:$0xff]
    %v104 = vld [vmem:[#allocation9 + $0x100] sm:$0xff]
    %v105 = vld [vmem:[#allocation9 + $0x108] sm:$0xff]
    %v106 = vld [vmem:[#allocation9 + $0x110] sm:$0xff]
    %v107 = vld [vmem:[#allocation9 + $0x118] sm:$0xff]
    %v108 = vld [vmem:[#allocation9 + $0x120] sm:$0xff]
    %v109 = vld [vmem:[#allocation9 + $0x128] sm:$0xff]
    %v110 = vld [vmem:[#allocation9 + $0x130] sm:$0xff]
    %v111 = vld [vmem:[#allocation9 + $0x138] sm:$0xff]
    %v112 = vld [vmem:[#allocation9 + $0x140] sm:$0xff]
    %v113 = vld [vmem:[#allocation9 + $0x148] sm:$0xff]
    %v114 = vld [vmem:[#allocation9 + $0x150] sm:$0xff]
    %v115 = vld [vmem:[#allocation9 + $0x158] sm:$0xff]
    %v116 = vld [vmem:[#allocation9 + $0x160] sm:$0xff]
    %v117 = vld [vmem:[#allocation9 + $0x168] sm:$0xff]
    %v118 = vld [vmem:[#allocation9 + $0x170] sm:$0xff]
    %v119 = vld [vmem:[#allocation9 + $0x178] sm:$0xff]
    %v120 = vld [vmem:[#allocation9 + $0x180] sm:$0xff]
    %v121 = vld [vmem:[#allocation9 + $0x188] sm:$0xff]
    %v122 = vld [vmem:[#allocation9 + $0x190] sm:$0xff]
    %v123 = vld [vmem:[#allocation9 + $0x198] sm:$0xff]
    %v124 = vld [vmem:[#allocation9 + $0x1a0] sm:$0xff]
    %v125 = vld [vmem:[#allocation9 + $0x1a8] sm:$0xff]
    %v126 = vld [vmem:[#allocation9 + $0x1b0] sm:$0xff]
    %v127 = vld [vmem:[#allocation9 + $0x1b8] sm:$0xff]
    %v128 = vld [vmem:[#allocation9 + $0x1c0] sm:$0xff]
    %v129 = vld [vmem:[#allocation9 + $0x1c8] sm:$0xff]
    %v130 = vld [vmem:[#allocation9 + $0x1d0] sm:$0xff]
    %v131 = vld [vmem:[#allocation9 + $0x1d8] sm:$0xff]
    %v132 = vld [vmem:[#allocation9 + $0x1e0] sm:$0xff]
    %v133 = vld [vmem:[#allocation9 + $0x1e8] sm:$0xff]
    %v134 = vld [vmem:[#allocation9 + $0x1f0] sm:$0xff]
    %v135 = vld [vmem:[#allocation9 + $0x1f8] sm:$0xff]
    %v136 = vld [vmem:[#allocation6] sm:$0xf]
    %v137 = vld [vmem:[#allocation7] sm:$0xf]
    %s138 = sld [smem:[#allocation2]]
    %v139 = vstv %s138
    %v140 = vmul.f32 %v139, %v136
    %v141 = vadd.f32 %v140, %v137
    %142 = vmatprep.subr.mxu0 %v133
    %143 = vmatpush1.msra.mxu0 %v132
    %144 = vmatprep.subr.mxu0 %v129
    %145 = vmatpush1.msra.mxu0 %v128
    %146 = vmatprep.subr.mxu0 %v125
    %147 = vmatpush1.msra.mxu0 %v124
    %148 = vmatprep.subr.mxu0 %v121
    %149 = vmatpush1.msra.mxu0 %v120
    %150 = vmatprep.subr.mxu0 %v117
    %151 = vmatpush1.msra.mxu0 %v116
    %152 = vmatprep.subr.mxu0 %v113
    %153 = vmatpush1.msra.mxu0 %v112
    %154 = vmatprep.subr.mxu0 %v109
    %155 = vmatpush1.msra.mxu0 %v108
    %156 = vmatprep.subr.mxu0 %v105
    %157 = vmatpush1.msra.mxu0 %v104
    %158 = vmatprep.subr.mxu0 %v101
    %159 = vmatpush1.msra.mxu0 %v100
    %160 = vmatprep.subr.mxu0 %v97
    %161 = vmatpush1.msra.mxu0 %v96
    %162 = vmatprep.subr.mxu0 %v93
    %163 = vmatpush1.msra.mxu0 %v92
    %164 = vmatprep.subr.mxu0 %v89
    %165 = vmatpush1.msra.mxu0 %v88
    %166 = vmatprep.subr.mxu0 %v85
    %167 = vmatpush1.msra.mxu0 %v84
    %168 = vmatprep.subr.mxu0 %v81
    %169 = vmatpush1.msra.mxu0 %v80
    %170 = vmatprep.subr.mxu0 %v77
    %171 = vmatpush1.msra.mxu0 %v76
    %172 = vmatprep.subr.mxu0 %v73
    %173 = vmatpush1.msra.mxu0 %v72
    %174 = vmatprep.subr.mxu0 0.0
    %175 = vmatpush2.msra.mxu0 0.0
    %176 = vmatprep.subr.mxu0 0.0
    %177 = vmatpush2.msra.mxu0 0.0
    %178 = vmatprep.subr.mxu0 0.0
    %179 = vmatpush2.msra.mxu0 0.0
    %180 = vmatprep.subr.mxu0 0.0
    %181 = vmatpush2.msra.mxu0 0.0
    %182 = vmatprep.subr.mxu0 0.0
    %183 = vmatpush2.msra.mxu0 0.0
    %184 = vmatprep.subr.mxu0 0.0
    %185 = vmatpush2.msra.mxu0 0.0
    %186 = vmatprep.subr.mxu0 0.0
    %187 = vmatpush2.msra.mxu0 0.0
    %188 = vmatprep.subr.mxu0 0.0
    %189 = vmatpush2.msra.mxu0 0.0
    %190 = vmatprep.subr.mxu0 0.0
    %191 = vmatpush2.msra.mxu0 0.0
    %192 = vmatprep.subr.mxu0 0.0
    %193 = vmatpush2.msra.mxu0 0.0
    %194 = vmatprep.subr.mxu0 0.0
    %195 = vmatpush2.msra.mxu0 0.0
    %196 = vmatprep.subr.mxu0 0.0
    %197 = vmatpush2.msra.mxu0 0.0
    %198 = vmatprep.subr.mxu0 0.0
    %199 = vmatpush2.msra.mxu0 0.0
    %200 = vmatprep.subr.mxu0 0.0
    %201 = vmatpush2.msra.mxu0 0.0
    %202 = vmatprep.subr.mxu0 0.0
    %203 = vmatpush2.msra.mxu0 0.0
    %204 = vmatprep.subr.mxu0 0.0
    %205 = vmatpush2.msra.mxu0 0.0
    %206 = vmatprep.mubr.f32.mxu0 0.0
    %207 = vmatmul.mubr.f32.gmra.mxu0 0.0
    %v208 = vpop.f32.mrf.mxu0
    %v209 = vadd.f32 0.0, %v208
    %v210 = vpop.f32.mrf.mxu0
    %v211 = vadd.f32 0.0, %v210
    %212 = vdwg.mxu0
    %213 = vmatprep.subr.mxu0 %v135
    %214 = vmatpush1.msra.mxu0 %v134
    %215 = vmatprep.subr.mxu0 %v131
    %216 = vmatpush1.msra.mxu0 %v130
    %217 = vmatprep.subr.mxu0 %v127
    %218 = vmatpush1.msra.mxu0 %v126
    %219 = vmatprep.subr.mxu0 %v123
    %220 = vmatpush1.msra.mxu0 %v122
    %221 = vmatprep.subr.mxu0 %v119
    %222 = vmatpush1.msra.mxu0 %v118
    %223 = vmatprep.subr.mxu0 %v115
    %224 = vmatpush1.msra.mxu0 %v114
    %225 = vmatprep.subr.mxu0 %v111
    %226 = vmatpush1.msra.mxu0 %v110
    %227 = vmatprep.subr.mxu0 %v107
    %228 = vmatpush1.msra.mxu0 %v106
    %229 = vmatprep.subr.mxu0 %v103
    %230 = vmatpush1.msra.mxu0 %v102
    %231 = vmatprep.subr.mxu0 %v99
    %232 = vmatpush1.msra.mxu0 %v98
    %233 = vmatprep.subr.mxu0 %v95
    %234 = vmatpush1.msra.mxu0 %v94
    %235 = vmatprep.subr.mxu0 %v91
    %236 = vmatpush1.msra.mxu0 %v90
    %237 = vmatprep.subr.mxu0 %v87
    %238 = vmatpush1.msra.mxu0 %v86
    %239 = vmatprep.subr.mxu0 %v83
    %240 = vmatpush1.msra.mxu0 %v82
    %241 = vmatprep.subr.mxu0 %v79
    %242 = vmatpush1.msra.mxu0 %v78
    %243 = vmatprep.subr.mxu0 %v75
    %244 = vmatpush1.msra.mxu0 %v74
    %245 = vmatprep.subr.mxu0 0.0
    %246 = vmatpush2.msra.mxu0 0.0
    %247 = vmatprep.subr.mxu0 0.0
    %248 = vmatpush2.msra.mxu0 0.0
    %249 = vmatprep.subr.mxu0 0.0
    %250 = vmatpush2.msra.mxu0 0.0
    %251 = vmatprep.subr.mxu0 0.0
    %252 = vmatpush2.msra.mxu0 0.0
    %253 = vmatprep.subr.mxu0 0.0
    %254 = vmatpush2.msra.mxu0 0.0
    %255 = vmatprep.subr.mxu0 0.0
    %256 = vmatpush2.msra.mxu0 0.0
    %257 = vmatprep.subr.mxu0 0.0
    %258 = vmatpush2.msra.mxu0 0.0
    %259 = vmatprep.subr.mxu0 0.0
    %260 = vmatpush2.msra.mxu0 0.0
    %261 = vmatprep.subr.mxu0 0.0
    %262 = vmatpush2.msra.mxu0 0.0
    %263 = vmatprep.subr.mxu0 0.0
    %264 = vmatpush2.msra.mxu0 0.0
    %265 = vmatprep.subr.mxu0 0.0
    %266 = vmatpush2.msra.mxu0 0.0
    %267 = vmatprep.subr.mxu0 0.0
    %268 = vmatpush2.msra.mxu0 0.0
    %269 = vmatprep.subr.mxu0 0.0
    %270 = vmatpush2.msra.mxu0 0.0
    %271 = vmatprep.subr.mxu0 0.0
    %272 = vmatpush2.msra.mxu0 0.0
    %273 = vmatprep.subr.mxu0 0.0
    %274 = vmatpush2.msra.mxu0 0.0
    %275 = vmatprep.subr.mxu0 0.0
    %276 = vmatpush2.msra.mxu0 0.0
    %277 = vmatprep.mubr.f32.mxu0 0.0
    %278 = vmatmul.mubr.f32.gmra.mxu0 0.0
    %v279 = vpop.f32.mrf.mxu0
    %v280 = vadd.f32 0.0, %v279
    %v281 = vpop.f32.mrf.mxu0
    %v282 = vadd.f32 0.0, %v281
    %283 = vdwg.mxu0
    %v288 = vcombine.low %v209, %v211
    %v289 = vcombine.low %v280, %v282
    %v291 = vunpack.c.l.s4 1966171168
    %v292 = vunpack.c.0.s8 %v291
    %v293 = vlaneseq
    %v294 = vshrl.u32 %v293, 7
    %v295 = vsub.s32 %v292, %v294
    %v296 = vrot.slane %v288, %v295
    %v298 = vunpack.c.l.s4 1966171168
    %v299 = vunpack.c.0.s8 %v298
    %v300 = vlaneseq
    %v301 = vshrl.u32 %v300, 7
    %v302 = vsub.s32 %v299, %v301
    %v303 = vrot.slane %v289, %v302
    %v304 = vcombine.low %v296, %v303
    %v306 = vunpack.c.l.s4 1966171168
    %v307 = vunpack.c.0.s8 %v306
    %v308 = vlaneseq
    %v309 = vshrl.u32 %v308, 7
    %v310 = vsub.s32 %v307, %v309
    %v311 = vrot.slane %v304, %v310
    %v313 = vadd.f32 %v141, %v311
    %v314 = vxor.u32 %v313, 2147483648
    %v315 = vmul.f32 %v314, 1.442695
    %v316 = vpow.pop %v315
    %v317 = vadd.f32 %v316, 1.0
    %v318 = vrcp.pop %v317
    %v319 = vmul.f32 1.0, %v318
    %v321 = vrot.slane %v313, 1
    %v323 = vxor.u32 %v321, 2147483648
    %v324 = vmul.f32 %v323, 1.442695
    %v325 = vpow.pop %v324
    %v326 = vadd.f32 %v325, 1.0
    %v327 = vrcp.pop %v326
    %v328 = vmul.f32 1.0, %v327
    %v329 = vrot.slane %v313, 2
    %v331 = vtanh.pop %v329
    %v332 = vrot.slane %v313, 3
    %v334 = vxor.u32 %v332, 2147483648
    %v335 = vmul.f32 %v334, 1.442695
    %v336 = vpow.pop %v335
    %v337 = vadd.f32 %v336, 1.0
    %v338 = vrcp.pop %v337
    %v339 = vmul.f32 1.0, %v338
    %v340 = vmul.f32 %v328, 0.0
    %v341 = vmul.f32 %v319, %v331
    %v342 = vadd.f32 %v340, %v341
    %v343 = vtanh.pop %v342
    %v344 = vmul.f32 %v339, %v343
    %s345 = sld [smem:[#allocation2 + $0x1]]
    %v346 = vstv %s345
    %v347 = vmul.f32 %v346, %v136
    %v348 = vadd.f32 %v347, %v137
    %349 = vmatprep.subr.mxu0 %v133
    %350 = vmatpush1.msra.mxu0 %v132
    %351 = vmatprep.subr.mxu0 %v129
    %352 = vmatpush1.msra.mxu0 %v128
    %353 = vmatprep.subr.mxu0 %v125
    %354 = vmatpush1.msra.mxu0 %v124
    %355 = vmatprep.subr.mxu0 %v121
    %356 = vmatpush1.msra.mxu0 %v120
    %357 = vmatprep.subr.mxu0 %v117
    %358 = vmatpush1.msra.mxu0 %v116
    %359 = vmatprep.subr.mxu0 %v113
    %360 = vmatpush1.msra.mxu0 %v112
    %361 = vmatprep.subr.mxu0 %v109
    %362 = vmatpush1.msra.mxu0 %v108
    %363 = vmatprep.subr.mxu0 %v105
    %364 = vmatpush1.msra.mxu0 %v104
    %365 = vmatprep.subr.mxu0 %v101
    %366 = vmatpush1.msra.mxu0 %v100
    %367 = vmatprep.subr.mxu0 %v97
    %368 = vmatpush1.msra.mxu0 %v96
    %369 = vmatprep.subr.mxu0 %v93
    %370 = vmatpush1.msra.mxu0 %v92
    %371 = vmatprep.subr.mxu0 %v89
    %372 = vmatpush1.msra.mxu0 %v88
    %373 = vmatprep.subr.mxu0 %v85
    %374 = vmatpush1.msra.mxu0 %v84
    %375 = vmatprep.subr.mxu0 %v81
    %376 = vmatpush1.msra.mxu0 %v80
    %377 = vmatprep.subr.mxu0 %v77
    %378 = vmatpush1.msra.mxu0 %v76
    %379 = vmatprep.subr.mxu0 %v73
    %380 = vmatpush1.msra.mxu0 %v72
    %381 = vmatprep.subr.mxu0 0.0
    %382 = vmatpush2.msra.mxu0 0.0
    %383 = vmatprep.subr.mxu0 0.0
    %384 = vmatpush2.msra.mxu0 0.0
    %385 = vmatprep.subr.mxu0 0.0
    %386 = vmatpush2.msra.mxu0 0.0
    %387 = vmatprep.subr.mxu0 0.0
    %388 = vmatpush2.msra.mxu0 0.0
    %389 = vmatprep.subr.mxu0 0.0
    %390 = vmatpush2.msra.mxu0 0.0
    %391 = vmatprep.subr.mxu0 0.0
    %392 = vmatpush2.msra.mxu0 0.0
    %393 = vmatprep.subr.mxu0 0.0
    %394 = vmatpush2.msra.mxu0 0.0
    %395 = vmatprep.subr.mxu0 0.0
    %396 = vmatpush2.msra.mxu0 0.0
    %397 = vmatprep.subr.mxu0 0.0
    %398 = vmatpush2.msra.mxu0 0.0
    %399 = vmatprep.subr.mxu0 0.0
    %400 = vmatpush2.msra.mxu0 0.0
    %401 = vmatprep.subr.mxu0 0.0
    %402 = vmatpush2.msra.mxu0 0.0
    %403 = vmatprep.subr.mxu0 0.0
    %404 = vmatpush2.msra.mxu0 0.0
    %405 = vmatprep.subr.mxu0 0.0
    %406 = vmatpush2.msra.mxu0 0.0
    %407 = vmatprep.subr.mxu0 0.0
    %408 = vmatpush2.msra.mxu0 0.0
    %409 = vmatprep.subr.mxu0 0.0
    %410 = vmatpush2.msra.mxu0 0.0
    %411 = vmatprep.subr.mxu0 0.0
    %412 = vmatpush2.msra.mxu0 0.0
    %413 = vmatprep.mubr.f32.mxu0 0.0
    %414 = vmatmul.mubr.f32.gmra.mxu0 %v344
    %v415 = vpop.f32.mrf.mxu0
    %v416 = vadd.f32 0.0, %v415
    %v417 = vpop.f32.mrf.mxu0
    %v418 = vadd.f32 0.0, %v417
    %419 = vdwg.mxu0
    %420 = vmatprep.subr.mxu0 %v135
    %421 = vmatpush1.msra.mxu0 %v134
    %422 = vmatprep.subr.mxu0 %v131
    %423 = vmatpush1.msra.mxu0 %v130
    %424 = vmatprep.subr.mxu0 %v127
    %425 = vmatpush1.msra.mxu0 %v126
    %426 = vmatprep.subr.mxu0 %v123
    %427 = vmatpush1.msra.mxu0 %v122
    %428 = vmatprep.subr.mxu0 %v119
    %429 = vmatpush1.msra.mxu0 %v118
    %430 = vmatprep.subr.mxu0 %v115
    %431 = vmatpush1.msra.mxu0 %v114
    %432 = vmatprep.subr.mxu0 %v111
    %433 = vmatpush1.msra.mxu0 %v110
    %434 = vmatprep.subr.mxu0 %v107
    %435 = vmatpush1.msra.mxu0 %v106
    %436 = vmatprep.subr.mxu0 %v103
    %437 = vmatpush1.msra.mxu0 %v102
    %438 = vmatprep.subr.mxu0 %v99
    %439 = vmatpush1.msra.mxu0 %v98
    %440 = vmatprep.subr.mxu0 %v95
    %441 = vmatpush1.msra.mxu0 %v94
    %442 = vmatprep.subr.mxu0 %v91
    %443 = vmatpush1.msra.mxu0 %v90
    %444 = vmatprep.subr.mxu0 %v87
    %445 = vmatpush1.msra.mxu0 %v86
    %446 = vmatprep.subr.mxu0 %v83
    %447 = vmatpush1.msra.mxu0 %v82
    %448 = vmatprep.subr.mxu0 %v79
    %449 = vmatpush1.msra.mxu0 %v78
    %450 = vmatprep.subr.mxu0 %v75
    %451 = vmatpush1.msra.mxu0 %v74
    %452 = vmatprep.subr.mxu0 0.0
    %453 = vmatpush2.msra.mxu0 0.0
    %454 = vmatprep.subr.mxu0 0.0
    %455 = vmatpush2.msra.mxu0 0.0
    %456 = vmatprep.subr.mxu0 0.0
    %457 = vmatpush2.msra.mxu0 0.0
    %458 = vmatprep.subr.mxu0 0.0
    %459 = vmatpush2.msra.mxu0 0.0
    %460 = vmatprep.subr.mxu0 0.0
    %461 = vmatpush2.msra.mxu0 0.0
    %462 = vmatprep.subr.mxu0 0.0
    %463 = vmatpush2.msra.mxu0 0.0
    %464 = vmatprep.subr.mxu0 0.0
    %465 = vmatpush2.msra.mxu0 0.0
    %466 = vmatprep.subr.mxu0 0.0
    %467 = vmatpush2.msra.mxu0 0.0
    %468 = vmatprep.subr.mxu0 0.0
    %469 = vmatpush2.msra.mxu0 0.0
    %470 = vmatprep.subr.mxu0 0.0
    %471 = vmatpush2.msra.mxu0 0.0
    %472 = vmatprep.subr.mxu0 0.0
    %473 = vmatpush2.msra.mxu0 0.0
    %474 = vmatprep.subr.mxu0 0.0
    %475 = vmatpush2.msra.mxu0 0.0
    %476 = vmatprep.subr.mxu0 0.0
    %477 = vmatpush2.msra.mxu0 0.0
    %478 = vmatprep.subr.mxu0 0.0
    %479 = vmatpush2.msra.mxu0 0.0
    %480 = vmatprep.subr.mxu0 0.0
    %481 = vmatpush2.msra.mxu0 0.0
    %482 = vmatprep.subr.mxu0 0.0
    %483 = vmatpush2.msra.mxu0 0.0
    %484 = vmatprep.mubr.f32.mxu0 0.0
    %485 = vmatmul.mubr.f32.gmra.mxu0 %v344
    %v486 = vpop.f32.mrf.mxu0
    %v487 = vadd.f32 0.0, %v486
    %v488 = vpop.f32.mrf.mxu0
    %v489 = vadd.f32 0.0, %v488
    %490 = vdwg.mxu0
    %v495 = vcombine.low %v416, %v418
    %v496 = vcombine.low %v487, %v489
    %v498 = vunpack.c.l.s4 1966171168
    %v499 = vunpack.c.0.s8 %v498
    %v500 = vlaneseq
    %v501 = vshrl.u32 %v500, 7
    %v502 = vsub.s32 %v499, %v501
    %v503 = vrot.slane %v495, %v502
    %v505 = vunpack.c.l.s4 1966171168
    %v506 = vunpack.c.0.s8 %v505
    %v507 = vlaneseq
    %v508 = vshrl.u32 %v507, 7
    %v509 = vsub.s32 %v506, %v508
    %v510 = vrot.slane %v496, %v509
    %v511 = vcombine.low %v503, %v510
    %v513 = vunpack.c.l.s4 1966171168
    %v514 = vunpack.c.0.s8 %v513
    %v515 = vlaneseq
    %v516 = vshrl.u32 %v515, 7
    %v517 = vsub.s32 %v514, %v516
    %v518 = vrot.slane %v511, %v517
    %v520 = vadd.f32 %v348, %v518
    %v521 = vxor.u32 %v520, 2147483648
    %v522 = vmul.f32 %v521, 1.442695
    %v523 = vpow.pop %v522
    %v524 = vadd.f32 %v523, 1.0
    %v525 = vrcp.pop %v524
    %v526 = vmul.f32 1.0, %v525
    %v528 = vrot.slane %v520, 1
    %v530 = vxor.u32 %v528, 2147483648
    %v531 = vmul.f32 %v530, 1.442695
    %v532 = vpow.pop %v531
    %v533 = vadd.f32 %v532, 1.0
    %v534 = vrcp.pop %v533
    %v535 = vmul.f32 1.0, %v534
    %v536 = vrot.slane %v520, 2
    %v538 = vtanh.pop %v536
    %v539 = vrot.slane %v520, 3
    %v541 = vxor.u32 %v539, 2147483648
    %v542 = vmul.f32 %v541, 1.442695
    %v543 = vpow.pop %v542
    %v544 = vadd.f32 %v543, 1.0
    %v545 = vrcp.pop %v544
    %v546 = vmul.f32 1.0, %v545
    %v547 = vmul.f32 %v535, %v342
    %v548 = vmul.f32 %v526, %v538
    %v549 = vadd.f32 %v547, %v548
    %v550 = vtanh.pop %v549
    %v551 = vmul.f32 %v546, %v550
    %s552 = sld [smem:[#allocation2 + $0x2]]
    %v553 = vstv %s552
    %v554 = vmul.f32 %v553, %v136
    %v555 = vadd.f32 %v554, %v137
    %556 = vmatprep.subr.mxu0 %v133
    %557 = vmatpush1.msra.mxu0 %v132
    %558 = vmatprep.subr.mxu0 %v129
    %559 = vmatpush1.msra.mxu0 %v128
    %560 = vmatprep.subr.mxu0 %v125
    %561 = vmatpush1.msra.mxu0 %v124
    %562 = vmatprep.subr.mxu0 %v121
    %563 = vmatpush1.msra.mxu0 %v120
    %564 = vmatprep.subr.mxu0 %v117
    %565 = vmatpush1.msra.mxu0 %v116
    %566 = vmatprep.subr.mxu0 %v113
    %567 = vmatpush1.msra.mxu0 %v112
    %568 = vmatprep.subr.mxu0 %v109
    %569 = vmatpush1.msra.mxu0 %v108
    %570 = vmatprep.subr.mxu0 %v105
    %571 = vmatpush1.msra.mxu0 %v104
    %572 = vmatprep.subr.mxu0 %v101
    %573 = vmatpush1.msra.mxu0 %v100
    %574 = vmatprep.subr.mxu0 %v97
    %575 = vmatpush1.msra.mxu0 %v96
    %576 = vmatprep.subr.mxu0 %v93
    %577 = vmatpush1.msra.mxu0 %v92
    %578 = vmatprep.subr.mxu0 %v89
    %579 = vmatpush1.msra.mxu0 %v88
    %580 = vmatprep.subr.mxu0 %v85
    %581 = vmatpush1.msra.mxu0 %v84
    %582 = vmatprep.subr.mxu0 %v81
    %583 = vmatpush1.msra.mxu0 %v80
    %584 = vmatprep.subr.mxu0 %v77
    %585 = vmatpush1.msra.mxu0 %v76
    %586 = vmatprep.subr.mxu0 %v73
    %587 = vmatpush1.msra.mxu0 %v72
    %588 = vmatprep.subr.mxu0 0.0
    %589 = vmatpush2.msra.mxu0 0.0
    %590 = vmatprep.subr.mxu0 0.0
    %591 = vmatpush2.msra.mxu0 0.0
    %592 = vmatprep.subr.mxu0 0.0
    %593 = vmatpush2.msra.mxu0 0.0
    %594 = vmatprep.subr.mxu0 0.0
    %595 = vmatpush2.msra.mxu0 0.0
    %596 = vmatprep.subr.mxu0 0.0
    %597 = vmatpush2.msra.mxu0 0.0
    %598 = vmatprep.subr.mxu0 0.0
    %599 = vmatpush2.msra.mxu0 0.0
    %600 = vmatprep.subr.mxu0 0.0
    %601 = vmatpush2.msra.mxu0 0.0
    %602 = vmatprep.subr.mxu0 0.0
    %603 = vmatpush2.msra.mxu0 0.0
    %604 = vmatprep.subr.mxu0 0.0
    %605 = vmatpush2.msra.mxu0 0.0
    %606 = vmatprep.subr.mxu0 0.0
    %607 = vmatpush2.msra.mxu0 0.0
    %608 = vmatprep.subr.mxu0 0.0
    %609 = vmatpush2.msra.mxu0 0.0
    %610 = vmatprep.subr.mxu0 0.0
    %611 = vmatpush2.msra.mxu0 0.0
    %612 = vmatprep.subr.mxu0 0.0
    %613 = vmatpush2.msra.mxu0 0.0
    %614 = vmatprep.subr.mxu0 0.0
    %615 = vmatpush2.msra.mxu0 0.0
    %616 = vmatprep.subr.mxu0 0.0
    %617 = vmatpush2.msra.mxu0 0.0
    %618 = vmatprep.subr.mxu0 0.0
    %619 = vmatpush2.msra.mxu0 0.0
    %620 = vmatprep.mubr.f32.mxu0 0.0
    %621 = vmatmul.mubr.f32.gmra.mxu0 %v551
    %v622 = vpop.f32.mrf.mxu0
    %v623 = vadd.f32 0.0, %v622
    %v624 = vpop.f32.mrf.mxu0
    %v625 = vadd.f32 0.0, %v624
    %626 = vdwg.mxu0
    %627 = vmatprep.subr.mxu0 %v135
    %628 = vmatpush1.msra.mxu0 %v134
    %629 = vmatprep.subr.mxu0 %v131
    %630 = vmatpush1.msra.mxu0 %v130
    %631 = vmatprep.subr.mxu0 %v127
    %632 = vmatpush1.msra.mxu0 %v126
    %633 = vmatprep.subr.mxu0 %v123
    %634 = vmatpush1.msra.mxu0 %v122
    %635 = vmatprep.subr.mxu0 %v119
    %636 = vmatpush1.msra.mxu0 %v118
    %637 = vmatprep.subr.mxu0 %v115
    %638 = vmatpush1.msra.mxu0 %v114
    %639 = vmatprep.subr.mxu0 %v111
    %640 = vmatpush1.msra.mxu0 %v110
    %641 = vmatprep.subr.mxu0 %v107
    %642 = vmatpush1.msra.mxu0 %v106
    %643 = vmatprep.subr.mxu0 %v103
    %644 = vmatpush1.msra.mxu0 %v102
    %645 = vmatprep.subr.mxu0 %v99
    %646 = vmatpush1.msra.mxu0 %v98
    %647 = vmatprep.subr.mxu0 %v95
    %648 = vmatpush1.msra.mxu0 %v94
    %649 = vmatprep.subr.mxu0 %v91
    %650 = vmatpush1.msra.mxu0 %v90
    %651 = vmatprep.subr.mxu0 %v87
    %652 = vmatpush1.msra.mxu0 %v86
    %653 = vmatprep.subr.mxu0 %v83
    %654 = vmatpush1.msra.mxu0 %v82
    %655 = vmatprep.subr.mxu0 %v79
    %656 = vmatpush1.msra.mxu0 %v78
    %657 = vmatprep.subr.mxu0 %v75
    %658 = vmatpush1.msra.mxu0 %v74
    %659 = vmatprep.subr.mxu0 0.0
    %660 = vmatpush2.msra.mxu0 0.0
    %661 = vmatprep.subr.mxu0 0.0
    %662 = vmatpush2.msra.mxu0 0.0
    %663 = vmatprep.subr.mxu0 0.0
    %664 = vmatpush2.msra.mxu0 0.0
    %665 = vmatprep.subr.mxu0 0.0
    %666 = vmatpush2.msra.mxu0 0.0
    %667 = vmatprep.subr.mxu0 0.0
    %668 = vmatpush2.msra.mxu0 0.0
    %669 = vmatprep.subr.mxu0 0.0
    %670 = vmatpush2.msra.mxu0 0.0
    %671 = vmatprep.subr.mxu0 0.0
    %672 = vmatpush2.msra.mxu0 0.0
    %673 = vmatprep.subr.mxu0 0.0
    %674 = vmatpush2.msra.mxu0 0.0
    %675 = vmatprep.subr.mxu0 0.0
    %676 = vmatpush2.msra.mxu0 0.0
    %677 = vmatprep.subr.mxu0 0.0
    %678 = vmatpush2.msra.mxu0 0.0
    %679 = vmatprep.subr.mxu0 0.0
    %680 = vmatpush2.msra.mxu0 0.0
    %681 = vmatprep.subr.mxu0 0.0
    %682 = vmatpush2.msra.mxu0 0.0
    %683 = vmatprep.subr.mxu0 0.0
    %684 = vmatpush2.msra.mxu0 0.0
    %685 = vmatprep.subr.mxu0 0.0
    %686 = vmatpush2.msra.mxu0 0.0
    %687 = vmatprep.subr.mxu0 0.0
    %688 = vmatpush2.msra.mxu0 0.0
    %689 = vmatprep.subr.mxu0 0.0
    %690 = vmatpush2.msra.mxu0 0.0
    %691 = vmatprep.mubr.f32.mxu0 0.0
    %692 = vmatmul.mubr.f32.gmra.mxu0 %v551
    %v693 = vpop.f32.mrf.mxu0
    %v694 = vadd.f32 0.0, %v693
    %v695 = vpop.f32.mrf.mxu0
    %v696 = vadd.f32 0.0, %v695
    %697 = vdwg.mxu0
    %v702 = vcombine.low %v623, %v625
    %v703 = vcombine.low %v694, %v696
    %v705 = vunpack.c.l.s4 1966171168
    %v706 = vunpack.c.0.s8 %v705
    %v707 = vlaneseq
    %v708 = vshrl.u32 %v707, 7
    %v709 = vsub.s32 %v706, %v708
    %v710 = vrot.slane %v702, %v709
    %v712 = vunpack.c.l.s4 1966171168
    %v713 = vunpack.c.0.s8 %v712
    %v714 = vlaneseq
    %v715 = vshrl.u32 %v714, 7
    %v716 = vsub.s32 %v713, %v715
    %v717 = vrot.slane %v703, %v716
    %v718 = vcombine.low %v710, %v717
    %v720 = vunpack.c.l.s4 1966171168
    %v721 = vunpack.c.0.s8 %v720
    %v722 = vlaneseq
    %v723 = vshrl.u32 %v722, 7
    %v724 = vsub.s32 %v721, %v723
    %v725 = vrot.slane %v718, %v724
    %v727 = vadd.f32 %v555, %v725
    %v728 = vxor.u32 %v727, 2147483648
    %v729 = vmul.f32 %v728, 1.442695
    %v730 = vpow.pop %v729
    %v731 = vadd.f32 %v730, 1.0
    %v732 = vrcp.pop %v731
    %v733 = vmul.f32 1.0, %v732
    %v735 = vrot.slane %v727, 1
    %v737 = vxor.u32 %v735, 2147483648
    %v738 = vmul.f32 %v737, 1.442695
    %v739 = vpow.pop %v738
    %v740 = vadd.f32 %v739, 1.0
    %v741 = vrcp.pop %v740
    %v742 = vmul.f32 1.0, %v741
    %v743 = vrot.slane %v727, 2
    %v745 = vtanh.pop %v743
    %v746 = vrot.slane %v727, 3
    %v748 = vxor.u32 %v746, 2147483648
    %v749 = vmul.f32 %v748, 1.442695
    %v750 = vpow.pop %v749
    %v751 = vadd.f32 %v750, 1.0
    %v752 = vrcp.pop %v751
    %v753 = vmul.f32 1.0, %v752
    %v754 = vmul.f32 %v742, %v549
    %v755 = vmul.f32 %v733, %v745
    %v756 = vadd.f32 %v754, %v755
    %v757 = vtanh.pop %v756
    %v758 = vmul.f32 %v753, %v757
    %s759 = sld [smem:[#allocation2 + $0x3]]
    %v760 = vstv %s759
    %v761 = vmul.f32 %v760, %v136
    %v762 = vadd.f32 %v761, %v137
    %763 = vmatprep.subr.mxu0 %v133
    %764 = vmatpush1.msra.mxu0 %v132
    %765 = vmatprep.subr.mxu0 %v129
    %766 = vmatpush1.msra.mxu0 %v128
    %767 = vmatprep.subr.mxu0 %v125
    %768 = vmatpush1.msra.mxu0 %v124
    %769 = vmatprep.subr.mxu0 %v121
    %770 = vmatpush1.msra.mxu0 %v120
    %771 = vmatprep.subr.mxu0 %v117
    %772 = vmatpush1.msra.mxu0 %v116
    %773 = vmatprep.subr.mxu0 %v113
    %774 = vmatpush1.msra.mxu0 %v112
    %775 = vmatprep.subr.mxu0 %v109
    %776 = vmatpush1.msra.mxu0 %v108
    %777 = vmatprep.subr.mxu0 %v105
    %778 = vmatpush1.msra.mxu0 %v104
    %779 = vmatprep.subr.mxu0 %v101
    %780 = vmatpush1.msra.mxu0 %v100
    %781 = vmatprep.subr.mxu0 %v97
    %782 = vmatpush1.msra.mxu0 %v96
    %783 = vmatprep.subr.mxu0 %v93
    %784 = vmatpush1.msra.mxu0 %v92
    %785 = vmatprep.subr.mxu0 %v89
    %786 = vmatpush1.msra.mxu0 %v88
    %787 = vmatprep.subr.mxu0 %v85
    %788 = vmatpush1.msra.mxu0 %v84
    %789 = vmatprep.subr.mxu0 %v81
    %790 = vmatpush1.msra.mxu0 %v80
    %791 = vmatprep.subr.mxu0 %v77
    %792 = vmatpush1.msra.mxu0 %v76
    %793 = vmatprep.subr.mxu0 %v73
    %794 = vmatpush1.msra.mxu0 %v72
    %795 = vmatprep.subr.mxu0 0.0
    %796 = vmatpush2.msra.mxu0 0.0
    %797 = vmatprep.subr.mxu0 0.0
    %798 = vmatpush2.msra.mxu0 0.0
    %799 = vmatprep.subr.mxu0 0.0
    %800 = vmatpush2.msra.mxu0 0.0
    %801 = vmatprep.subr.mxu0 0.0
    %802 = vmatpush2.msra.mxu0 0.0
    %803 = vmatprep.subr.mxu0 0.0
    %804 = vmatpush2.msra.mxu0 0.0
    %805 = vmatprep.subr.mxu0 0.0
    %806 = vmatpush2.msra.mxu0 0.0
    %807 = vmatprep.subr.mxu0 0.0
    %808 = vmatpush2.msra.mxu0 0.0
    %809 = vmatprep.subr.mxu0 0.0
    %810 = vmatpush2.msra.mxu0 0.0
    %811 = vmatprep.subr.mxu0 0.0
    %812 = vmatpush2.msra.mxu0 0.0
    %813 = vmatprep.subr.mxu0 0.0
    %814 = vmatpush2.msra.mxu0 0.0
    %815 = vmatprep.subr.mxu0 0.0
    %816 = vmatpush2.msra.mxu0 0.0
    %817 = vmatprep.subr.mxu0 0.0
    %818 = vmatpush2.msra.mxu0 0.0
    %819 = vmatprep.subr.mxu0 0.0
    %820 = vmatpush2.msra.mxu0 0.0
    %821 = vmatprep.subr.mxu0 0.0
    %822 = vmatpush2.msra.mxu0 0.0
    %823 = vmatprep.subr.mxu0 0.0
    %824 = vmatpush2.msra.mxu0 0.0
    %825 = vmatprep.subr.mxu0 0.0
    %826 = vmatpush2.msra.mxu0 0.0
    %827 = vmatprep.mubr.f32.mxu0 0.0
    %828 = vmatmul.mubr.f32.gmra.mxu0 %v758
    %v829 = vpop.f32.mrf.mxu0
    %v830 = vadd.f32 0.0, %v829
    %v831 = vpop.f32.mrf.mxu0
    %v832 = vadd.f32 0.0, %v831
    %833 = vdwg.mxu0
    %834 = vmatprep.subr.mxu0 %v135
    %835 = vmatpush1.msra.mxu0 %v134
    %836 = vmatprep.subr.mxu0 %v131
    %837 = vmatpush1.msra.mxu0 %v130
    %838 = vmatprep.subr.mxu0 %v127
    %839 = vmatpush1.msra.mxu0 %v126
    %840 = vmatprep.subr.mxu0 %v123
    %841 = vmatpush1.msra.mxu0 %v122
    %842 = vmatprep.subr.mxu0 %v119
    %843 = vmatpush1.msra.mxu0 %v118
    %844 = vmatprep.subr.mxu0 %v115
    %845 = vmatpush1.msra.mxu0 %v114
    %846 = vmatprep.subr.mxu0 %v111
    %847 = vmatpush1.msra.mxu0 %v110
    %848 = vmatprep.subr.mxu0 %v107
    %849 = vmatpush1.msra.mxu0 %v106
    %850 = vmatprep.subr.mxu0 %v103
    %851 = vmatpush1.msra.mxu0 %v102
    %852 = vmatprep.subr.mxu0 %v99
    %853 = vmatpush1.msra.mxu0 %v98
    %854 = vmatprep.subr.mxu0 %v95
    %855 = vmatpush1.msra.mxu0 %v94
    %856 = vmatprep.subr.mxu0 %v91
    %857 = vmatpush1.msra.mxu0 %v90
    %858 = vmatprep.subr.mxu0 %v87
    %859 = vmatpush1.msra.mxu0 %v86
    %860 = vmatprep.subr.mxu0 %v83
    %861 = vmatpush1.msra.mxu0 %v82
    %862 = vmatprep.subr.mxu0 %v79
    %863 = vmatpush1.msra.mxu0 %v78
    %864 = vmatprep.subr.mxu0 %v75
    %865 = vmatpush1.msra.mxu0 %v74
    %866 = vmatprep.subr.mxu0 0.0
    %867 = vmatpush2.msra.mxu0 0.0
    %868 = vmatprep.subr.mxu0 0.0
    %869 = vmatpush2.msra.mxu0 0.0
    %870 = vmatprep.subr.mxu0 0.0
    %871 = vmatpush2.msra.mxu0 0.0
    %872 = vmatprep.subr.mxu0 0.0
    %873 = vmatpush2.msra.mxu0 0.0
    %874 = vmatprep.subr.mxu0 0.0
    %875 = vmatpush2.msra.mxu0 0.0
    %876 = vmatprep.subr.mxu0 0.0
    %877 = vmatpush2.msra.mxu0 0.0
    %878 = vmatprep.subr.mxu0 0.0
    %879 = vmatpush2.msra.mxu0 0.0
    %880 = vmatprep.subr.mxu0 0.0
    %881 = vmatpush2.msra.mxu0 0.0
    %882 = vmatprep.subr.mxu0 0.0
    %883 = vmatpush2.msra.mxu0 0.0
    %884 = vmatprep.subr.mxu0 0.0
    %885 = vmatpush2.msra.mxu0 0.0
    %886 = vmatprep.subr.mxu0 0.0
    %887 = vmatpush2.msra.mxu0 0.0
    %888 = vmatprep.subr.mxu0 0.0
    %889 = vmatpush2.msra.mxu0 0.0
    %890 = vmatprep.subr.mxu0 0.0
    %891 = vmatpush2.msra.mxu0 0.0
    %892 = vmatprep.subr.mxu0 0.0
    %893 = vmatpush2.msra.mxu0 0.0
    %894 = vmatprep.subr.mxu0 0.0
    %895 = vmatpush2.msra.mxu0 0.0
    %896 = vmatprep.subr.mxu0 0.0
    %897 = vmatpush2.msra.mxu0 0.0
    %898 = vmatprep.mubr.f32.mxu0 0.0
    %899 = vmatmul.mubr.f32.gmra.mxu0 %v758
    %v900 = vpop.f32.mrf.mxu0
    %v901 = vadd.f32 0.0, %v900
    %v902 = vpop.f32.mrf.mxu0
    %v903 = vadd.f32 0.0, %v902
    %904 = vdwg.mxu0
    %v909 = vcombine.low %v830, %v832
    %v910 = vcombine.low %v901, %v903
    %v912 = vunpack.c.l.s4 1966171168
    %v913 = vunpack.c.0.s8 %v912
    %v914 = vlaneseq
    %v915 = vshrl.u32 %v914, 7
    %v916 = vsub.s32 %v913, %v915
    %v917 = vrot.slane %v909, %v916
    %v919 = vunpack.c.l.s4 1966171168
    %v920 = vunpack.c.0.s8 %v919
    %v921 = vlaneseq
    %v922 = vshrl.u32 %v921, 7
    %v923 = vsub.s32 %v920, %v922
    %v924 = vrot.slane %v910, %v923
    %v925 = vcombine.low %v917, %v924
    %v927 = vunpack.c.l.s4 1966171168
    %v928 = vunpack.c.0.s8 %v927
    %v929 = vlaneseq
    %v930 = vshrl.u32 %v929, 7
    %v931 = vsub.s32 %v928, %v930
    %v932 = vrot.slane %v925, %v931
    %v934 = vadd.f32 %v762, %v932
    %v935 = vxor.u32 %v934, 2147483648
    %v936 = vmul.f32 %v935, 1.442695
    %v937 = vpow.pop %v936
    %v938 = vadd.f32 %v937, 1.0
    %v939 = vrcp.pop %v938
    %v940 = vmul.f32 1.0, %v939
    %v942 = vrot.slane %v934, 1
    %v944 = vxor.u32 %v942, 2147483648
    %v945 = vmul.f32 %v944, 1.442695
    %v946 = vpow.pop %v945
    %v947 = vadd.f32 %v946, 1.0
    %v948 = vrcp.pop %v947
    %v949 = vmul.f32 1.0, %v948
    %v950 = vrot.slane %v934, 2
    %v952 = vtanh.pop %v950
    %v953 = vrot.slane %v934, 3
    %v955 = vxor.u32 %v953, 2147483648
    %v956 = vmul.f32 %v955, 1.442695
    %v957 = vpow.pop %v956
    %v958 = vadd.f32 %v957, 1.0
    %v959 = vrcp.pop %v958
    %v960 = vmul.f32 1.0, %v959
    %v961 = vmul.f32 %v949, %v756
    %v962 = vmul.f32 %v940, %v952
    %v963 = vadd.f32 %v961, %v962
    %v964 = vtanh.pop %v963
    %v965 = vmul.f32 %v960, %v964
    %s966 = sld [smem:[#allocation2 + $0x4]]
    %v967 = vstv %s966
    %v968 = vmul.f32 %v967, %v136
    %v969 = vadd.f32 %v968, %v137
    %970 = vmatprep.subr.mxu0 %v133
    %971 = vmatpush1.msra.mxu0 %v132
    %972 = vmatprep.subr.mxu0 %v129
    %973 = vmatpush1.msra.mxu0 %v128
    %974 = vmatprep.subr.mxu0 %v125
    %975 = vmatpush1.msra.mxu0 %v124
    %976 = vmatprep.subr.mxu0 %v121
    %977 = vmatpush1.msra.mxu0 %v120
    %978 = vmatprep.subr.mxu0 %v117
    %979 = vmatpush1.msra.mxu0 %v116
    %980 = vmatprep.subr.mxu0 %v113
    %981 = vmatpush1.msra.mxu0 %v112
    %982 = vmatprep.subr.mxu0 %v109
    %983 = vmatpush1.msra.mxu0 %v108
    %984 = vmatprep.subr.mxu0 %v105
    %985 = vmatpush1.msra.mxu0 %v104
    %986 = vmatprep.subr.mxu0 %v101
    %987 = vmatpush1.msra.mxu0 %v100
    %988 = vmatprep.subr.mxu0 %v97
    %989 = vmatpush1.msra.mxu0 %v96
    %990 = vmatprep.subr.mxu0 %v93
    %991 = vmatpush1.msra.mxu0 %v92
    %992 = vmatprep.subr.mxu0 %v89
    %993 = vmatpush1.msra.mxu0 %v88
    %994 = vmatprep.subr.mxu0 %v85
    %995 = vmatpush1.msra.mxu0 %v84
    %996 = vmatprep.subr.mxu0 %v81
    %997 = vmatpush1.msra.mxu0 %v80
    %998 = vmatprep.subr.mxu0 %v77
    %999 = vmatpush1.msra.mxu0 %v76
    %1000 = vmatprep.subr.mxu0 %v73
    %1001 = vmatpush1.msra.mxu0 %v72
    %1002 = vmatprep.subr.mxu0 0.0
    %1003 = vmatpush2.msra.mxu0 0.0
    %1004 = vmatprep.subr.mxu0 0.0
    %1005 = vmatpush2.msra.mxu0 0.0
    %1006 = vmatprep.subr.mxu0 0.0
    %1007 = vmatpush2.msra.mxu0 0.0
    %1008 = vmatprep.subr.mxu0 0.0
    %1009 = vmatpush2.msra.mxu0 0.0
    %1010 = vmatprep.subr.mxu0 0.0
    %1011 = vmatpush2.msra.mxu0 0.0
    %1012 = vmatprep.subr.mxu0 0.0
    %1013 = vmatpush2.msra.mxu0 0.0
    %1014 = vmatprep.subr.mxu0 0.0
    %1015 = vmatpush2.msra.mxu0 0.0
    %1016 = vmatprep.subr.mxu0 0.0
    %1017 = vmatpush2.msra.mxu0 0.0
    %1018 = vmatprep.subr.mxu0 0.0
    %1019 = vmatpush2.msra.mxu0 0.0
    %1020 = vmatprep.subr.mxu0 0.0
    %1021 = vmatpush2.msra.mxu0 0.0
    %1022 = vmatprep.subr.mxu0 0.0
    %1023 = vmatpush2.msra.mxu0 0.0
    %1024 = vmatprep.subr.mxu0 0.0
    %1025 = vmatpush2.msra.mxu0 0.0
    %1026 = vmatprep.subr.mxu0 0.0
    %1027 = vmatpush2.msra.mxu0 0.0
    %1028 = vmatprep.subr.mxu0 0.0
    %1029 = vmatpush2.msra.mxu0 0.0
    %1030 = vmatprep.subr.mxu0 0.0
    %1031 = vmatpush2.msra.mxu0 0.0
    %1032 = vmatprep.subr.mxu0 0.0
    %1033 = vmatpush2.msra.mxu0 0.0
    %1034 = vmatprep.mubr.f32.mxu0 0.0
    %1035 = vmatmul.mubr.f32.gmra.mxu0 %v965
    %v1036 = vpop.f32.mrf.mxu0
    %v1037 = vadd.f32 0.0, %v1036
    %v1038 = vpop.f32.mrf.mxu0
    %v1039 = vadd.f32 0.0, %v1038
    %1040 = vdwg.mxu0
    %1041 = vmatprep.subr.mxu0 %v135
    %1042 = vmatpush1.msra.mxu0 %v134
    %1043 = vmatprep.subr.mxu0 %v131
    %1044 = vmatpush1.msra.mxu0 %v130
    %1045 = vmatprep.subr.mxu0 %v127
    %1046 = vmatpush1.msra.mxu0 %v126
    %1047 = vmatprep.subr.mxu0 %v123
    %1048 = vmatpush1.msra.mxu0 %v122
    %1049 = vmatprep.subr.mxu0 %v119
    %1050 = vmatpush1.msra.mxu0 %v118
    %1051 = vmatprep.subr.mxu0 %v115
    %1052 = vmatpush1.msra.mxu0 %v114
    %1053 = vmatprep.subr.mxu0 %v111
    %1054 = vmatpush1.msra.mxu0 %v110
    %1055 = vmatprep.subr.mxu0 %v107
    %1056 = vmatpush1.msra.mxu0 %v106
    %1057 = vmatprep.subr.mxu0 %v103
    %1058 = vmatpush1.msra.mxu0 %v102
    %1059 = vmatprep.subr.mxu0 %v99
    %1060 = vmatpush1.msra.mxu0 %v98
    %1061 = vmatprep.subr.mxu0 %v95
    %1062 = vmatpush1.msra.mxu0 %v94
    %1063 = vmatprep.subr.mxu0 %v91
    %1064 = vmatpush1.msra.mxu0 %v90
    %1065 = vmatprep.subr.mxu0 %v87
    %1066 = vmatpush1.msra.mxu0 %v86
    %1067 = vmatprep.subr.mxu0 %v83
    %1068 = vmatpush1.msra.mxu0 %v82
    %1069 = vmatprep.subr.mxu0 %v79
    %1070 = vmatpush1.msra.mxu0 %v78
    %1071 = vmatprep.subr.mxu0 %v75
    %1072 = vmatpush1.msra.mxu0 %v74
    %1073 = vmatprep.subr.mxu0 0.0
    %1074 = vmatpush2.msra.mxu0 0.0
    %1075 = vmatprep.subr.mxu0 0.0
    %1076 = vmatpush2.msra.mxu0 0.0
    %1077 = vmatprep.subr.mxu0 0.0
    %1078 = vmatpush2.msra.mxu0 0.0
    %1079 = vmatprep.subr.mxu0 0.0
    %1080 = vmatpush2.msra.mxu0 0.0
    %1081 = vmatprep.subr.mxu0 0.0
    %1082 = vmatpush2.msra.mxu0 0.0
    %1083 = vmatprep.subr.mxu0 0.0
    %1084 = vmatpush2.msra.mxu0 0.0
    %1085 = vmatprep.subr.mxu0 0.0
    %1086 = vmatpush2.msra.mxu0 0.0
    %1087 = vmatprep.subr.mxu0 0.0
    %1088 = vmatpush2.msra.mxu0 0.0
    %1089 = vmatprep.subr.mxu0 0.0
    %1090 = vmatpush2.msra.mxu0 0.0
    %1091 = vmatprep.subr.mxu0 0.0
    %1092 = vmatpush2.msra.mxu0 0.0
    %1093 = vmatprep.subr.mxu0 0.0
    %1094 = vmatpush2.msra.mxu0 0.0
    %1095 = vmatprep.subr.mxu0 0.0
    %1096 = vmatpush2.msra.mxu0 0.0
    %1097 = vmatprep.subr.mxu0 0.0
    %1098 = vmatpush2.msra.mxu0 0.0
    %1099 = vmatprep.subr.mxu0 0.0
    %1100 = vmatpush2.msra.mxu0 0.0
    %1101 = vmatprep.subr.mxu0 0.0
    %1102 = vmatpush2.msra.mxu0 0.0
    %1103 = vmatprep.subr.mxu0 0.0
    %1104 = vmatpush2.msra.mxu0 0.0
    %1105 = vmatprep.mubr.f32.mxu0 0.0
    %1106 = vmatmul.mubr.f32.gmra.mxu0 %v965
    %v1107 = vpop.f32.mrf.mxu0
    %v1108 = vadd.f32 0.0, %v1107
    %v1109 = vpop.f32.mrf.mxu0
    %v1110 = vadd.f32 0.0, %v1109
    %1111 = vdwg.mxu0
    %v1116 = vcombine.low %v1037, %v1039
    %v1117 = vcombine.low %v1108, %v1110
    %v1119 = vunpack.c.l.s4 1966171168
    %v1120 = vunpack.c.0.s8 %v1119
    %v1121 = vlaneseq
    %v1122 = vshrl.u32 %v1121, 7
    %v1123 = vsub.s32 %v1120, %v1122
    %v1124 = vrot.slane %v1116, %v1123
    %v1126 = vunpack.c.l.s4 1966171168
    %v1127 = vunpack.c.0.s8 %v1126
    %v1128 = vlaneseq
    %v1129 = vshrl.u32 %v1128, 7
    %v1130 = vsub.s32 %v1127, %v1129
    %v1131 = vrot.slane %v1117, %v1130
    %v1132 = vcombine.low %v1124, %v1131
    %v1134 = vunpack.c.l.s4 1966171168
    %v1135 = vunpack.c.0.s8 %v1134
    %v1136 = vlaneseq
    %v1137 = vshrl.u32 %v1136, 7
    %v1138 = vsub.s32 %v1135, %v1137
    %v1139 = vrot.slane %v1132, %v1138
    %v1141 = vadd.f32 %v969, %v1139
    %v1142 = vxor.u32 %v1141, 2147483648
    %v1143 = vmul.f32 %v1142, 1.442695
    %v1144 = vpow.pop %v1143
    %v1145 = vadd.f32 %v1144, 1.0
    %v1146 = vrcp.pop %v1145
    %v1147 = vmul.f32 1.0, %v1146
    %v1149 = vrot.slane %v1141, 1
    %v1151 = vxor.u32 %v1149, 2147483648
    %v1152 = vmul.f32 %v1151, 1.442695
    %v1153 = vpow.pop %v1152
    %v1154 = vadd.f32 %v1153, 1.0
    %v1155 = vrcp.pop %v1154
    %v1156 = vmul.f32 1.0, %v1155
    %v1157 = vrot.slane %v1141, 2
    %v1159 = vtanh.pop %v1157
    %v1160 = vrot.slane %v1141, 3
    %v1162 = vxor.u32 %v1160, 2147483648
    %v1163 = vmul.f32 %v1162, 1.442695
    %v1164 = vpow.pop %v1163
    %v1165 = vadd.f32 %v1164, 1.0
    %v1166 = vrcp.pop %v1165
    %v1167 = vmul.f32 1.0, %v1166
    %v1168 = vmul.f32 %v1156, %v963
    %v1169 = vmul.f32 %v1147, %v1159
    %v1170 = vadd.f32 %v1168, %v1169
    %v1171 = vtanh.pop %v1170
    %v1172 = vmul.f32 %v1167, %v1171
    %s1173 = sld [smem:[#allocation2 + $0x5]]
    %v1174 = vstv %s1173
    %v1175 = vmul.f32 %v1174, %v136
    %v1176 = vadd.f32 %v1175, %v137
    %1177 = vmatprep.subr.mxu0 %v133
    %1178 = vmatpush1.msra.mxu0 %v132
    %1179 = vmatprep.subr.mxu0 %v129
    %1180 = vmatpush1.msra.mxu0 %v128
    %1181 = vmatprep.subr.mxu0 %v125
    %1182 = vmatpush1.msra.mxu0 %v124
    %1183 = vmatprep.subr.mxu0 %v121
    %1184 = vmatpush1.msra.mxu0 %v120
    %1185 = vmatprep.subr.mxu0 %v117
    %1186 = vmatpush1.msra.mxu0 %v116
    %1187 = vmatprep.subr.mxu0 %v113
    %1188 = vmatpush1.msra.mxu0 %v112
    %1189 = vmatprep.subr.mxu0 %v109
    %1190 = vmatpush1.msra.mxu0 %v108
    %1191 = vmatprep.subr.mxu0 %v105
    %1192 = vmatpush1.msra.mxu0 %v104
    %1193 = vmatprep.subr.mxu0 %v101
    %1194 = vmatpush1.msra.mxu0 %v100
    %1195 = vmatprep.subr.mxu0 %v97
    %1196 = vmatpush1.msra.mxu0 %v96
    %1197 = vmatprep.subr.mxu0 %v93
    %1198 = vmatpush1.msra.mxu0 %v92
    %1199 = vmatprep.subr.mxu0 %v89
    %1200 = vmatpush1.msra.mxu0 %v88
    %1201 = vmatprep.subr.mxu0 %v85
    %1202 = vmatpush1.msra.mxu0 %v84
    %1203 = vmatprep.subr.mxu0 %v81
    %1204 = vmatpush1.msra.mxu0 %v80
    %1205 = vmatprep.subr.mxu0 %v77
    %1206 = vmatpush1.msra.mxu0 %v76
    %1207 = vmatprep.subr.mxu0 %v73
    %1208 = vmatpush1.msra.mxu0 %v72
    %1209 = vmatprep.subr.mxu0 0.0
    %1210 = vmatpush2.msra.mxu0 0.0
    %1211 = vmatprep.subr.mxu0 0.0
    %1212 = vmatpush2.msra.mxu0 0.0
    %1213 = vmatprep.subr.mxu0 0.0
    %1214 = vmatpush2.msra.mxu0 0.0
    %1215 = vmatprep.subr.mxu0 0.0
    %1216 = vmatpush2.msra.mxu0 0.0
    %1217 = vmatprep.subr.mxu0 0.0
    %1218 = vmatpush2.msra.mxu0 0.0
    %1219 = vmatprep.subr.mxu0 0.0
    %1220 = vmatpush2.msra.mxu0 0.0
    %1221 = vmatprep.subr.mxu0 0.0
    %1222 = vmatpush2.msra.mxu0 0.0
    %1223 = vmatprep.subr.mxu0 0.0
    %1224 = vmatpush2.msra.mxu0 0.0
    %1225 = vmatprep.subr.mxu0 0.0
    %1226 = vmatpush2.msra.mxu0 0.0
    %1227 = vmatprep.subr.mxu0 0.0
    %1228 = vmatpush2.msra.mxu0 0.0
    %1229 = vmatprep.subr.mxu0 0.0
    %1230 = vmatpush2.msra.mxu0 0.0
    %1231 = vmatprep.subr.mxu0 0.0
    %1232 = vmatpush2.msra.mxu0 0.0
    %1233 = vmatprep.subr.mxu0 0.0
    %1234 = vmatpush2.msra.mxu0 0.0
    %1235 = vmatprep.subr.mxu0 0.0
    %1236 = vmatpush2.msra.mxu0 0.0
    %1237 = vmatprep.subr.mxu0 0.0
    %1238 = vmatpush2.msra.mxu0 0.0
    %1239 = vmatprep.subr.mxu0 0.0
    %1240 = vmatpush2.msra.mxu0 0.0
    %1241 = vmatprep.mubr.f32.mxu0 0.0
    %1242 = vmatmul.mubr.f32.gmra.mxu0 %v1172
    %v1243 = vpop.f32.mrf.mxu0
    %v1244 = vadd.f32 0.0, %v1243
    %v1245 = vpop.f32.mrf.mxu0
    %v1246 = vadd.f32 0.0, %v1245
    %1247 = vdwg.mxu0
    %1248 = vmatprep.subr.mxu0 %v135
    %1249 = vmatpush1.msra.mxu0 %v134
    %1250 = vmatprep.subr.mxu0 %v131
    %1251 = vmatpush1.msra.mxu0 %v130
    %1252 = vmatprep.subr.mxu0 %v127
    %1253 = vmatpush1.msra.mxu0 %v126
    %1254 = vmatprep.subr.mxu0 %v123
    %1255 = vmatpush1.msra.mxu0 %v122
    %1256 = vmatprep.subr.mxu0 %v119
    %1257 = vmatpush1.msra.mxu0 %v118
    %1258 = vmatprep.subr.mxu0 %v115
    %1259 = vmatpush1.msra.mxu0 %v114
    %1260 = vmatprep.subr.mxu0 %v111
    %1261 = vmatpush1.msra.mxu0 %v110
    %1262 = vmatprep.subr.mxu0 %v107
    %1263 = vmatpush1.msra.mxu0 %v106
    %1264 = vmatprep.subr.mxu0 %v103
    %1265 = vmatpush1.msra.mxu0 %v102
    %1266 = vmatprep.subr.mxu0 %v99
    %1267 = vmatpush1.msra.mxu0 %v98
    %1268 = vmatprep.subr.mxu0 %v95
    %1269 = vmatpush1.msra.mxu0 %v94
    %1270 = vmatprep.subr.mxu0 %v91
    %1271 = vmatpush1.msra.mxu0 %v90
    %1272 = vmatprep.subr.mxu0 %v87
    %1273 = vmatpush1.msra.mxu0 %v86
    %1274 = vmatprep.subr.mxu0 %v83
    %1275 = vmatpush1.msra.mxu0 %v82
    %1276 = vmatprep.subr.mxu0 %v79
    %1277 = vmatpush1.msra.mxu0 %v78
    %1278 = vmatprep.subr.mxu0 %v75
    %1279 = vmatpush1.msra.mxu0 %v74
    %1280 = vmatprep.subr.mxu0 0.0
    %1281 = vmatpush2.msra.mxu0 0.0
    %1282 = vmatprep.subr.mxu0 0.0
    %1283 = vmatpush2.msra.mxu0 0.0
    %1284 = vmatprep.subr.mxu0 0.0
    %1285 = vmatpush2.msra.mxu0 0.0
    %1286 = vmatprep.subr.mxu0 0.0
    %1287 = vmatpush2.msra.mxu0 0.0
    %1288 = vmatprep.subr.mxu0 0.0
    %1289 = vmatpush2.msra.mxu0 0.0
    %1290 = vmatprep.subr.mxu0 0.0
    %1291 = vmatpush2.msra.mxu0 0.0
    %1292 = vmatprep.subr.mxu0 0.0
    %1293 = vmatpush2.msra.mxu0 0.0
    %1294 = vmatprep.subr.mxu0 0.0
    %1295 = vmatpush2.msra.mxu0 0.0
    %1296 = vmatprep.subr.mxu0 0.0
    %1297 = vmatpush2.msra.mxu0 0.0
    %1298 = vmatprep.subr.mxu0 0.0
    %1299 = vmatpush2.msra.mxu0 0.0
    %1300 = vmatprep.subr.mxu0 0.0
    %1301 = vmatpush2.msra.mxu0 0.0
    %1302 = vmatprep.subr.mxu0 0.0
    %1303 = vmatpush2.msra.mxu0 0.0
    %1304 = vmatprep.subr.mxu0 0.0
    %1305 = vmatpush2.msra.mxu0 0.0
    %1306 = vmatprep.subr.mxu0 0.0
    %1307 = vmatpush2.msra.mxu0 0.0
    %1308 = vmatprep.subr.mxu0 0.0
    %1309 = vmatpush2.msra.mxu0 0.0
    %1310 = vmatprep.subr.mxu0 0.0
    %1311 = vmatpush2.msra.mxu0 0.0
    %1312 = vmatprep.mubr.f32.mxu0 0.0
    %1313 = vmatmul.mubr.f32.gmra.mxu0 %v1172
    %v1314 = vpop.f32.mrf.mxu0
    %v1315 = vadd.f32 0.0, %v1314
    %v1316 = vpop.f32.mrf.mxu0
    %v1317 = vadd.f32 0.0, %v1316
    %1318 = vdwg.mxu0
    %v1323 = vcombine.low %v1244, %v1246
    %v1324 = vcombine.low %v1315, %v1317
    %v1326 = vunpack.c.l.s4 1966171168
    %v1327 = vunpack.c.0.s8 %v1326
    %v1328 = vlaneseq
    %v1329 = vshrl.u32 %v1328, 7
    %v1330 = vsub.s32 %v1327, %v1329
    %v1331 = vrot.slane %v1323, %v1330
    %v1333 = vunpack.c.l.s4 1966171168
    %v1334 = vunpack.c.0.s8 %v1333
    %v1335 = vlaneseq
    %v1336 = vshrl.u32 %v1335, 7
    %v1337 = vsub.s32 %v1334, %v1336
    %v1338 = vrot.slane %v1324, %v1337
    %v1339 = vcombine.low %v1331, %v1338
    %v1341 = vunpack.c.l.s4 1966171168
    %v1342 = vunpack.c.0.s8 %v1341
    %v1343 = vlaneseq
    %v1344 = vshrl.u32 %v1343, 7
    %v1345 = vsub.s32 %v1342, %v1344
    %v1346 = vrot.slane %v1339, %v1345
    %v1348 = vadd.f32 %v1176, %v1346
    %v1349 = vxor.u32 %v1348, 2147483648
    %v1350 = vmul.f32 %v1349, 1.442695
    %v1351 = vpow.pop %v1350
    %v1352 = vadd.f32 %v1351, 1.0
    %v1353 = vrcp.pop %v1352
    %v1354 = vmul.f32 1.0, %v1353
    %v1356 = vrot.slane %v1348, 1
    %v1358 = vxor.u32 %v1356, 2147483648
    %v1359 = vmul.f32 %v1358, 1.442695
    %v1360 = vpow.pop %v1359
    %v1361 = vadd.f32 %v1360, 1.0
    %v1362 = vrcp.pop %v1361
    %v1363 = vmul.f32 1.0, %v1362
    %v1364 = vrot.slane %v1348, 2
    %v1366 = vtanh.pop %v1364
    %v1367 = vrot.slane %v1348, 3
    %v1369 = vxor.u32 %v1367, 2147483648
    %v1370 = vmul.f32 %v1369, 1.442695
    %v1371 = vpow.pop %v1370
    %v1372 = vadd.f32 %v1371, 1.0
    %v1373 = vrcp.pop %v1372
    %v1374 = vmul.f32 1.0, %v1373
    %v1375 = vmul.f32 %v1363, %v1170
    %v1376 = vmul.f32 %v1354, %v1366
    %v1377 = vadd.f32 %v1375, %v1376
    %v1378 = vtanh.pop %v1377
    %v1379 = vmul.f32 %v1374, %v1378
    %s1380 = sld [smem:[#allocation2 + $0x6]]
    %v1381 = vstv %s1380
    %v1382 = vmul.f32 %v1381, %v136
    %v1383 = vadd.f32 %v1382, %v137
    %1384 = vmatprep.subr.mxu0 %v133
    %1385 = vmatpush1.msra.mxu0 %v132
    %1386 = vmatprep.subr.mxu0 %v129
    %1387 = vmatpush1.msra.mxu0 %v128
    %1388 = vmatprep.subr.mxu0 %v125
    %1389 = vmatpush1.msra.mxu0 %v124
    %1390 = vmatprep.subr.mxu0 %v121
    %1391 = vmatpush1.msra.mxu0 %v120
    %1392 = vmatprep.subr.mxu0 %v117
    %1393 = vmatpush1.msra.mxu0 %v116
    %1394 = vmatprep.subr.mxu0 %v113
    %1395 = vmatpush1.msra.mxu0 %v112
    %1396 = vmatprep.subr.mxu0 %v109
    %1397 = vmatpush1.msra.mxu0 %v108
    %1398 = vmatprep.subr.mxu0 %v105
    %1399 = vmatpush1.msra.mxu0 %v104
    %1400 = vmatprep.subr.mxu0 %v101
    %1401 = vmatpush1.msra.mxu0 %v100
    %1402 = vmatprep.subr.mxu0 %v97
    %1403 = vmatpush1.msra.mxu0 %v96
    %1404 = vmatprep.subr.mxu0 %v93
    %1405 = vmatpush1.msra.mxu0 %v92
    %1406 = vmatprep.subr.mxu0 %v89
    %1407 = vmatpush1.msra.mxu0 %v88
    %1408 = vmatprep.subr.mxu0 %v85
    %1409 = vmatpush1.msra.mxu0 %v84
    %1410 = vmatprep.subr.mxu0 %v81
    %1411 = vmatpush1.msra.mxu0 %v80
    %1412 = vmatprep.subr.mxu0 %v77
    %1413 = vmatpush1.msra.mxu0 %v76
    %1414 = vmatprep.subr.mxu0 %v73
    %1415 = vmatpush1.msra.mxu0 %v72
    %1416 = vmatprep.subr.mxu0 0.0
    %1417 = vmatpush2.msra.mxu0 0.0
    %1418 = vmatprep.subr.mxu0 0.0
    %1419 = vmatpush2.msra.mxu0 0.0
    %1420 = vmatprep.subr.mxu0 0.0
    %1421 = vmatpush2.msra.mxu0 0.0
    %1422 = vmatprep.subr.mxu0 0.0
    %1423 = vmatpush2.msra.mxu0 0.0
    %1424 = vmatprep.subr.mxu0 0.0
    %1425 = vmatpush2.msra.mxu0 0.0
    %1426 = vmatprep.subr.mxu0 0.0
    %1427 = vmatpush2.msra.mxu0 0.0
    %1428 = vmatprep.subr.mxu0 0.0
    %1429 = vmatpush2.msra.mxu0 0.0
    %1430 = vmatprep.subr.mxu0 0.0
    %1431 = vmatpush2.msra.mxu0 0.0
    %1432 = vmatprep.subr.mxu0 0.0
    %1433 = vmatpush2.msra.mxu0 0.0
    %1434 = vmatprep.subr.mxu0 0.0
    %1435 = vmatpush2.msra.mxu0 0.0
    %1436 = vmatprep.subr.mxu0 0.0
    %1437 = vmatpush2.msra.mxu0 0.0
    %1438 = vmatprep.subr.mxu0 0.0
    %1439 = vmatpush2.msra.mxu0 0.0
    %1440 = vmatprep.subr.mxu0 0.0
    %1441 = vmatpush2.msra.mxu0 0.0
    %1442 = vmatprep.subr.mxu0 0.0
    %1443 = vmatpush2.msra.mxu0 0.0
    %1444 = vmatprep.subr.mxu0 0.0
    %1445 = vmatpush2.msra.mxu0 0.0
    %1446 = vmatprep.subr.mxu0 0.0
    %1447 = vmatpush2.msra.mxu0 0.0
    %1448 = vmatprep.mubr.f32.mxu0 0.0
    %1449 = vmatmul.mubr.f32.gmra.mxu0 %v1379
    %v1450 = vpop.f32.mrf.mxu0
    %v1451 = vadd.f32 0.0, %v1450
    %v1452 = vpop.f32.mrf.mxu0
    %v1453 = vadd.f32 0.0, %v1452
    %1454 = vdwg.mxu0
    %1455 = vmatprep.subr.mxu0 %v135
    %1456 = vmatpush1.msra.mxu0 %v134
    %1457 = vmatprep.subr.mxu0 %v131
    %1458 = vmatpush1.msra.mxu0 %v130
    %1459 = vmatprep.subr.mxu0 %v127
    %1460 = vmatpush1.msra.mxu0 %v126
    %1461 = vmatprep.subr.mxu0 %v123
    %1462 = vmatpush1.msra.mxu0 %v122
    %1463 = vmatprep.subr.mxu0 %v119
    %1464 = vmatpush1.msra.mxu0 %v118
    %1465 = vmatprep.subr.mxu0 %v115
    %1466 = vmatpush1.msra.mxu0 %v114
    %1467 = vmatprep.subr.mxu0 %v111
    %1468 = vmatpush1.msra.mxu0 %v110
    %1469 = vmatprep.subr.mxu0 %v107
    %1470 = vmatpush1.msra.mxu0 %v106
    %1471 = vmatprep.subr.mxu0 %v103
    %1472 = vmatpush1.msra.mxu0 %v102
    %1473 = vmatprep.subr.mxu0 %v99
    %1474 = vmatpush1.msra.mxu0 %v98
    %1475 = vmatprep.subr.mxu0 %v95
    %1476 = vmatpush1.msra.mxu0 %v94
    %1477 = vmatprep.subr.mxu0 %v91
    %1478 = vmatpush1.msra.mxu0 %v90
    %1479 = vmatprep.subr.mxu0 %v87
    %1480 = vmatpush1.msra.mxu0 %v86
    %1481 = vmatprep.subr.mxu0 %v83
    %1482 = vmatpush1.msra.mxu0 %v82
    %1483 = vmatprep.subr.mxu0 %v79
    %1484 = vmatpush1.msra.mxu0 %v78
    %1485 = vmatprep.subr.mxu0 %v75
    %1486 = vmatpush1.msra.mxu0 %v74
    %1487 = vmatprep.subr.mxu0 0.0
    %1488 = vmatpush2.msra.mxu0 0.0
    %1489 = vmatprep.subr.mxu0 0.0
    %1490 = vmatpush2.msra.mxu0 0.0
    %1491 = vmatprep.subr.mxu0 0.0
    %1492 = vmatpush2.msra.mxu0 0.0
    %1493 = vmatprep.subr.mxu0 0.0
    %1494 = vmatpush2.msra.mxu0 0.0
    %1495 = vmatprep.subr.mxu0 0.0
    %1496 = vmatpush2.msra.mxu0 0.0
    %1497 = vmatprep.subr.mxu0 0.0
    %1498 = vmatpush2.msra.mxu0 0.0
    %1499 = vmatprep.subr.mxu0 0.0
    %1500 = vmatpush2.msra.mxu0 0.0
    %1501 = vmatprep.subr.mxu0 0.0
    %1502 = vmatpush2.msra.mxu0 0.0
    %1503 = vmatprep.subr.mxu0 0.0
    %1504 = vmatpush2.msra.mxu0 0.0
    %1505 = vmatprep.subr.mxu0 0.0
    %1506 = vmatpush2.msra.mxu0 0.0
    %1507 = vmatprep.subr.mxu0 0.0
    %1508 = vmatpush2.msra.mxu0 0.0
    %1509 = vmatprep.subr.mxu0 0.0
    %1510 = vmatpush2.msra.mxu0 0.0
    %1511 = vmatprep.subr.mxu0 0.0
    %1512 = vmatpush2.msra.mxu0 0.0
    %1513 = vmatprep.subr.mxu0 0.0
    %1514 = vmatpush2.msra.mxu0 0.0
    %1515 = vmatprep.subr.mxu0 0.0
    %1516 = vmatpush2.msra.mxu0 0.0
    %1517 = vmatprep.subr.mxu0 0.0
    %1518 = vmatpush2.msra.mxu0 0.0
    %1519 = vmatprep.mubr.f32.mxu0 0.0
    %1520 = vmatmul.mubr.f32.gmra.mxu0 %v1379
    %v1521 = vpop.f32.mrf.mxu0
    %v1522 = vadd.f32 0.0, %v1521
    %v1523 = vpop.f32.mrf.mxu0
    %v1524 = vadd.f32 0.0, %v1523
    %1525 = vdwg.mxu0
    %v1530 = vcombine.low %v1451, %v1453
    %v1531 = vcombine.low %v1522, %v1524
    %v1533 = vunpack.c.l.s4 1966171168
    %v1534 = vunpack.c.0.s8 %v1533
    %v1535 = vlaneseq
    %v1536 = vshrl.u32 %v1535, 7
    %v1537 = vsub.s32 %v1534, %v1536
    %v1538 = vrot.slane %v1530, %v1537
    %v1540 = vunpack.c.l.s4 1966171168
    %v1541 = vunpack.c.0.s8 %v1540
    %v1542 = vlaneseq
    %v1543 = vshrl.u32 %v1542, 7
    %v1544 = vsub.s32 %v1541, %v1543
    %v1545 = vrot.slane %v1531, %v1544
    %v1546 = vcombine.low %v1538, %v1545
    %v1548 = vunpack.c.l.s4 1966171168
    %v1549 = vunpack.c.0.s8 %v1548
    %v1550 = vlaneseq
    %v1551 = vshrl.u32 %v1550, 7
    %v1552 = vsub.s32 %v1549, %v1551
    %v1553 = vrot.slane %v1546, %v1552
    %v1555 = vadd.f32 %v1383, %v1553
    %v1556 = vxor.u32 %v1555, 2147483648
    %v1557 = vmul.f32 %v1556, 1.442695
    %v1558 = vpow.pop %v1557
    %v1559 = vadd.f32 %v1558, 1.0
    %v1560 = vrcp.pop %v1559
    %v1561 = vmul.f32 1.0, %v1560
    %v1563 = vrot.slane %v1555, 1
    %v1565 = vxor.u32 %v1563, 2147483648
    %v1566 = vmul.f32 %v1565, 1.442695
    %v1567 = vpow.pop %v1566
    %v1568 = vadd.f32 %v1567, 1.0
    %v1569 = vrcp.pop %v1568
    %v1570 = vmul.f32 1.0, %v1569
    %v1571 = vrot.slane %v1555, 2
    %v1573 = vtanh.pop %v1571
    %v1574 = vrot.slane %v1555, 3
    %v1576 = vxor.u32 %v1574, 2147483648
    %v1577 = vmul.f32 %v1576, 1.442695
    %v1578 = vpow.pop %v1577
    %v1579 = vadd.f32 %v1578, 1.0
    %v1580 = vrcp.pop %v1579
    %v1581 = vmul.f32 1.0, %v1580
    %v1582 = vmul.f32 %v1570, %v1377
    %v1583 = vmul.f32 %v1561, %v1573
    %v1584 = vadd.f32 %v1582, %v1583
    %v1585 = vtanh.pop %v1584
    %v1586 = vmul.f32 %v1581, %v1585
    %s1587 = sld [smem:[#allocation2 + $0x7]]
    %v1588 = vstv %s1587
    %v1589 = vmul.f32 %v1588, %v136
    %v1590 = vadd.f32 %v1589, %v137
    %1591 = vmatprep.subr.mxu0 %v133
    %1592 = vmatpush1.msra.mxu0 %v132
    %1593 = vmatprep.subr.mxu0 %v129
    %1594 = vmatpush1.msra.mxu0 %v128
    %1595 = vmatprep.subr.mxu0 %v125
    %1596 = vmatpush1.msra.mxu0 %v124
    %1597 = vmatprep.subr.mxu0 %v121
    %1598 = vmatpush1.msra.mxu0 %v120
    %1599 = vmatprep.subr.mxu0 %v117
    %1600 = vmatpush1.msra.mxu0 %v116
    %1601 = vmatprep.subr.mxu0 %v113
    %1602 = vmatpush1.msra.mxu0 %v112
    %1603 = vmatprep.subr.mxu0 %v109
    %1604 = vmatpush1.msra.mxu0 %v108
    %1605 = vmatprep.subr.mxu0 %v105
    %1606 = vmatpush1.msra.mxu0 %v104
    %1607 = vmatprep.subr.mxu0 %v101
    %1608 = vmatpush1.msra.mxu0 %v100
    %1609 = vmatprep.subr.mxu0 %v97
    %1610 = vmatpush1.msra.mxu0 %v96
    %1611 = vmatprep.subr.mxu0 %v93
    %1612 = vmatpush1.msra.mxu0 %v92
    %1613 = vmatprep.subr.mxu0 %v89
    %1614 = vmatpush1.msra.mxu0 %v88
    %1615 = vmatprep.subr.mxu0 %v85
    %1616 = vmatpush1.msra.mxu0 %v84
    %1617 = vmatprep.subr.mxu0 %v81
    %1618 = vmatpush1.msra.mxu0 %v80
    %1619 = vmatprep.subr.mxu0 %v77
    %1620 = vmatpush1.msra.mxu0 %v76
    %1621 = vmatprep.subr.mxu0 %v73
    %1622 = vmatpush1.msra.mxu0 %v72
    %1623 = vmatprep.subr.mxu0 0.0
    %1624 = vmatpush2.msra.mxu0 0.0
    %1625 = vmatprep.subr.mxu0 0.0
    %1626 = vmatpush2.msra.mxu0 0.0
    %1627 = vmatprep.subr.mxu0 0.0
    %1628 = vmatpush2.msra.mxu0 0.0
    %1629 = vmatprep.subr.mxu0 0.0
    %1630 = vmatpush2.msra.mxu0 0.0
    %1631 = vmatprep.subr.mxu0 0.0
    %1632 = vmatpush2.msra.mxu0 0.0
    %1633 = vmatprep.subr.mxu0 0.0
    %1634 = vmatpush2.msra.mxu0 0.0
    %1635 = vmatprep.subr.mxu0 0.0
    %1636 = vmatpush2.msra.mxu0 0.0
    %1637 = vmatprep.subr.mxu0 0.0
    %1638 = vmatpush2.msra.mxu0 0.0
    %1639 = vmatprep.subr.mxu0 0.0
    %1640 = vmatpush2.msra.mxu0 0.0
    %1641 = vmatprep.subr.mxu0 0.0
    %1642 = vmatpush2.msra.mxu0 0.0
    %1643 = vmatprep.subr.mxu0 0.0
    %1644 = vmatpush2.msra.mxu0 0.0
    %1645 = vmatprep.subr.mxu0 0.0
    %1646 = vmatpush2.msra.mxu0 0.0
    %1647 = vmatprep.subr.mxu0 0.0
    %1648 = vmatpush2.msra.mxu0 0.0
    %1649 = vmatprep.subr.mxu0 0.0
    %1650 = vmatpush2.msra.mxu0 0.0
    %1651 = vmatprep.subr.mxu0 0.0
    %1652 = vmatpush2.msra.mxu0 0.0
    %1653 = vmatprep.subr.mxu0 0.0
    %1654 = vmatpush2.msra.mxu0 0.0
    %1655 = vmatprep.mubr.f32.mxu0 0.0
    %1656 = vmatmul.mubr.f32.gmra.mxu0 %v1586
    %v1657 = vpop.f32.mrf.mxu0
    %v1658 = vadd.f32 0.0, %v1657
    %v1659 = vpop.f32.mrf.mxu0
    %v1660 = vadd.f32 0.0, %v1659
    %1661 = vdwg.mxu0
    %1662 = vmatprep.subr.mxu0 %v135
    %1663 = vmatpush1.msra.mxu0 %v134
    %1664 = vmatprep.subr.mxu0 %v131
    %1665 = vmatpush1.msra.mxu0 %v130
    %1666 = vmatprep.subr.mxu0 %v127
    %1667 = vmatpush1.msra.mxu0 %v126
    %1668 = vmatprep.subr.mxu0 %v123
    %1669 = vmatpush1.msra.mxu0 %v122
    %1670 = vmatprep.subr.mxu0 %v119
    %1671 = vmatpush1.msra.mxu0 %v118
    %1672 = vmatprep.subr.mxu0 %v115
    %1673 = vmatpush1.msra.mxu0 %v114
    %1674 = vmatprep.subr.mxu0 %v111
    %1675 = vmatpush1.msra.mxu0 %v110
    %1676 = vmatprep.subr.mxu0 %v107
    %1677 = vmatpush1.msra.mxu0 %v106
    %1678 = vmatprep.subr.mxu0 %v103
    %1679 = vmatpush1.msra.mxu0 %v102
    %1680 = vmatprep.subr.mxu0 %v99
    %1681 = vmatpush1.msra.mxu0 %v98
    %1682 = vmatprep.subr.mxu0 %v95
    %1683 = vmatpush1.msra.mxu0 %v94
    %1684 = vmatprep.subr.mxu0 %v91
    %1685 = vmatpush1.msra.mxu0 %v90
    %1686 = vmatprep.subr.mxu0 %v87
    %1687 = vmatpush1.msra.mxu0 %v86
    %1688 = vmatprep.subr.mxu0 %v83
    %1689 = vmatpush1.msra.mxu0 %v82
    %1690 = vmatprep.subr.mxu0 %v79
    %1691 = vmatpush1.msra.mxu0 %v78
    %1692 = vmatprep.subr.mxu0 %v75
    %1693 = vmatpush1.msra.mxu0 %v74
    %1694 = vmatprep.subr.mxu0 0.0
    %1695 = vmatpush2.msra.mxu0 0.0
    %1696 = vmatprep.subr.mxu0 0.0
    %1697 = vmatpush2.msra.mxu0 0.0
    %1698 = vmatprep.subr.mxu0 0.0
    %1699 = vmatpush2.msra.mxu0 0.0
    %1700 = vmatprep.subr.mxu0 0.0
    %1701 = vmatpush2.msra.mxu0 0.0
    %1702 = vmatprep.subr.mxu0 0.0
    %1703 = vmatpush2.msra.mxu0 0.0
    %1704 = vmatprep.subr.mxu0 0.0
    %1705 = vmatpush2.msra.mxu0 0.0
    %1706 = vmatprep.subr.mxu0 0.0
    %1707 = vmatpush2.msra.mxu0 0.0
    %1708 = vmatprep.subr.mxu0 0.0
    %1709 = vmatpush2.msra.mxu0 0.0
    %1710 = vmatprep.subr.mxu0 0.0
    %1711 = vmatpush2.msra.mxu0 0.0
    %1712 = vmatprep.subr.mxu0 0.0
    %1713 = vmatpush2.msra.mxu0 0.0
    %1714 = vmatprep.subr.mxu0 0.0
    %1715 = vmatpush2.msra.mxu0 0.0
    %1716 = vmatprep.subr.mxu0 0.0
    %1717 = vmatpush2.msra.mxu0 0.0
    %1718 = vmatprep.subr.mxu0 0.0
    %1719 = vmatpush2.msra.mxu0 0.0
    %1720 = vmatprep.subr.mxu0 0.0
    %1721 = vmatpush2.msra.mxu0 0.0
    %1722 = vmatprep.subr.mxu0 0.0
    %1723 = vmatpush2.msra.mxu0 0.0
    %1724 = vmatprep.subr.mxu0 0.0
    %1725 = vmatpush2.msra.mxu0 0.0
    %1726 = vmatprep.mubr.f32.mxu0 0.0
    %1727 = vmatmul.mubr.f32.gmra.mxu0 %v1586
    %v1728 = vpop.f32.mrf.mxu0
    %v1729 = vadd.f32 0.0, %v1728
    %v1730 = vpop.f32.mrf.mxu0
    %v1731 = vadd.f32 0.0, %v1730
    %1732 = vdwg.mxu0
    %v1737 = vcombine.low %v1658, %v1660
    %v1738 = vcombine.low %v1729, %v1731
    %v1740 = vunpack.c.l.s4 1966171168
    %v1741 = vunpack.c.0.s8 %v1740
    %v1742 = vlaneseq
    %v1743 = vshrl.u32 %v1742, 7
    %v1744 = vsub.s32 %v1741, %v1743
    %v1745 = vrot.slane %v1737, %v1744
    %v1747 = vunpack.c.l.s4 1966171168
    %v1748 = vunpack.c.0.s8 %v1747
    %v1749 = vlaneseq
    %v1750 = vshrl.u32 %v1749, 7
    %v1751 = vsub.s32 %v1748, %v1750
    %v1752 = vrot.slane %v1738, %v1751
    %v1753 = vcombine.low %v1745, %v1752
    %v1755 = vunpack.c.l.s4 1966171168
    %v1756 = vunpack.c.0.s8 %v1755
    %v1757 = vlaneseq
    %v1758 = vshrl.u32 %v1757, 7
    %v1759 = vsub.s32 %v1756, %v1758
    %v1760 = vrot.slane %v1753, %v1759
    %v1762 = vadd.f32 %v1590, %v1760
    %v1763 = vxor.u32 %v1762, 2147483648
    %v1764 = vmul.f32 %v1763, 1.442695
    %v1765 = vpow.pop %v1764
    %v1766 = vadd.f32 %v1765, 1.0
    %v1767 = vrcp.pop %v1766
    %v1768 = vmul.f32 1.0, %v1767
    %v1770 = vrot.slane %v1762, 1
    %v1772 = vxor.u32 %v1770, 2147483648
    %v1773 = vmul.f32 %v1772, 1.442695
    %v1774 = vpow.pop %v1773
    %v1775 = vadd.f32 %v1774, 1.0
    %v1776 = vrcp.pop %v1775
    %v1777 = vmul.f32 1.0, %v1776
    %v1778 = vrot.slane %v1762, 2
    %v1780 = vtanh.pop %v1778
    %v1781 = vrot.slane %v1762, 3
    %v1783 = vxor.u32 %v1781, 2147483648
    %v1784 = vmul.f32 %v1783, 1.442695
    %v1785 = vpow.pop %v1784
    %v1786 = vadd.f32 %v1785, 1.0
    %v1787 = vrcp.pop %v1786
    %v1788 = vmul.f32 1.0, %v1787
    %v1789 = vmul.f32 %v1777, %v1584
    %v1790 = vmul.f32 %v1768, %v1780
    %v1791 = vadd.f32 %v1789, %v1790
    %v1792 = vtanh.pop %v1791
    %v1793 = vmul.f32 %v1788, %v1792
    %v1794 = vld [vmem:[%s4] sm:$0x1]
    %v1795 = vmul.f32 %v1793, %v1794
    %vm1796 = vcmask 1040384
    %v1797 = vsel %vm1796, %v1795, 0.0
    %1798 = vadd.xlane.f32.xlu0 %v1797
    %v1799 = vpop.xlane.xlu0 %1798
    %v1800 = vld [vmem:[%s5] sm:$0x1]
    %v1801 = vadd.f32 %v1799, %v1800
    %1802 = vst [vmem:[#allocation10] sm:$0x1] %v1801
    // Predicated region
    $region42: #{tpu_custom_call.1} parent=1 // pred_check
      _
    $region43: #{tpu_custom_call.1} parent=1 // pred_check_branch
      %1804 = sbr.rel (0) target = $region45
    $region44: #{tpu_custom_call.1} parent=1 // pred_region
      %s1806 = ssub.s32 16, 16
      %1807 = vsyncadd [#allocation4], %s1806
      %s1809 = sshll.u32 [#allocation10], 4
      %s1810 = int_to_ptr.vmem [resolvable:$true] %s1809
      %1812 = dma.vmem_to_hbm [thread:$0]  %s1810, 16, %s6, [#allocation4]
    $region45: #{tpu_custom_call.1} parent=1 // pred_fallthru
      _
    // Predicated region
    $region46: #{tpu_custom_call.1} parent=1 // pred_check
      _
    $region47: #{tpu_custom_call.1} parent=1 // pred_check_branch
      %1814 = sbr.rel (0) target = $region49
    $region48: #{tpu_custom_call.1} parent=1 // pred_region
      %1815 = dma.done [#allocation4], 16
    $region49: #{tpu_custom_call.1} parent=1 // pred_fallthru
      _
    %1816 = vsyncpa [#allocation3], 1
    %1817 = vsyncpa [#allocation8], 1
    %1818 = vsyncpa [#allocation4], 1
    %1819 = vsyncpa [#allocation5], 1

</llo_original>
